<compile_context>
chip_gen: v5e
topology: v5e:2x2
jax: 0.10.0
libtpu: 0.0.40
codegen_flags: <defaults>
</compile_context>

<pallas_src>
import functools
import math

import jax
import jax.numpy as jnp
from jax.experimental import pallas as pl
from jax.experimental.pallas import tpu as pltpu


_PARAM_ORDER = ("ln1w", "ln1b", "wqkv", "wout", "bout",
                "ln2w", "ln2b", "w1", "b1", "w2", "b2")
_MXU_PARAMS = ("wqkv", "wout", "w1", "w2")   # cast to the MXU operand dtype


def _recip(x):
    # EUP reciprocal — frees VALU slots (softmax denom, erf rational term).
    return pl.reciprocal(x, approx=True)


def _erf(x):
    # Abramowitz & Stegun 7.1.26 rational approximation (max abs err ~1.5e-7).
    p = 0.3275911
    a1, a2, a3, a4, a5 = (0.254829592, -0.284496736, 1.421413741,
                          -1.453152027, 1.061405429)
    ax = jnp.abs(x)
    t = _recip(1.0 + p * ax)
    poly = ((((a5 * t + a4) * t + a3) * t + a2) * t + a1) * t
    y = 1.0 - poly * jnp.exp(-ax * ax)
    return jnp.where(x >= 0, y, -y)


def _gelu(x):
    # nn.GELU() default = exact (erf-based) GELU.
    # TODO(synk): tanh-GELU would run on the EUP almost for free but deviates
    # from PyTorch's exact erf formulation; kept exact for semantics fidelity.
    return 0.5 * x * (1.0 + _erf(x * 0.7071067811865476))


def _layernorm(x, w, b, eps=1e-5):
    mu = jnp.mean(x, axis=-1, keepdims=True)
    var = jnp.mean(jnp.square(x - mu), axis=-1, keepdims=True)
    return (x - mu) * jax.lax.rsqrt(var + eps) * w + b


def transformer_kernel(x_ref,
                       ln1w_ref, ln1b_ref, wqkv_ref, wout_ref, bout_ref,
                       ln2w_ref, ln2b_ref, w1_ref, b1_ref, w2_ref, b2_ref,
                       o_ref, *, heads, dim_head, seq_len):
    d = pl.program_id(1)

    # Load the residual stream into the VMEM-resident output block once per
    # batch tile; afterwards o_ref carries x across the depth axis.
    @pl.when(d == 0)
    def _():
        o_ref[...] = x_ref[...]

    x = o_ref[...].astype(jnp.float32)                 # (TBN, D) residual stream
    TBN, D = x.shape
    N = seq_len
    TB = TBN // N
    inner = heads * dim_head
    scale = dim_head ** -0.5
    mxu = wqkv_ref.dtype                               # bf16 (or f32) operands

    # ---- Attention block: x = x + to_out(attend(LN(x))) --------------------
    xn = _layernorm(x, ln1w_ref[0], ln1b_ref[0]).astype(mxu)
    qkv = jnp.dot(xn, wqkv_ref[0],
                  preferred_element_type=jnp.float32)  # (TBN, 3*inner), f32 acc
    qkv = qkv.astype(mxu).reshape(TB, N, 3 * inner)

    # Per-head score / context einsums (single-batch-dim 3-D form); heads is a
    # tiny static unroll.  All heads then hit the full wout in ONE matmul —
    # no per-head wout slices and no per-head accumulation.
    ctx = []
    for h in range(heads):
        lo = h * dim_head
        qh = qkv[:, :, lo:lo + dim_head]                       # (TB, N, dh)
        kh = qkv[:, :, inner + lo:inner + lo + dim_head]
        vh = qkv[:, :, 2 * inner + lo:2 * inner + lo + dim_head]
        dots = jnp.einsum('bqd,bkd->bqk', qh, kh,
                          preferred_element_type=jnp.float32) * scale
        m = jnp.max(dots, axis=-1, keepdims=True)
        e = jnp.exp(dots - m)
        attn = e * _recip(jnp.sum(e, axis=-1, keepdims=True))  # softmax (EUP recip)
        # nn.Dropout on attn / to_out is identity in eval mode.
        ctx.append(jnp.einsum('bqk,bkd->bqd', attn.astype(mxu), vh,
                              preferred_element_type=jnp.float32))
    ctx = jnp.concatenate(ctx, axis=-1).reshape(TBN, inner).astype(mxu)
    attn_out = jnp.dot(ctx, wout_ref[0],
                       preferred_element_type=jnp.float32)     # single K=inner matmul
    x = x + attn_out + bout_ref[0]

    # ---- FeedForward block: x = x + W2 @ gelu(W1 @ LN(x) + b1) + b2 --------
    xn2 = _layernorm(x, ln2w_ref[0], ln2b_ref[0]).astype(mxu)
    hdn = jnp.dot(xn2, w1_ref[0], preferred_element_type=jnp.float32) + b1_ref[0]
    hdn = _gelu(hdn).astype(mxu)
    ff = jnp.dot(hdn, w2_ref[0], preferred_element_type=jnp.float32) + b2_ref[0]

    o_ref[...] = (x + ff).astype(o_ref.dtype)


def _default_block_b(B):
    # Give the "parallel" batch axis >= 2 grid steps when possible (v7x has
    # 2 TensorCores per chip); callers with big batches on v5e/v6e can pass a
    # larger block_b to amortize per-step overhead.
    if B <= 1:
        return max(B, 1)
    for b in range(B // 2, 0, -1):
        if B % b == 0:
            return b
    return 1


def transformer_forward(x, params, *, heads, dim_head, block_b=None,
                        mxu_dtype=jnp.bfloat16, vmem_limit_bytes=None):
    """x: (B, N, D) float32; params: dict of depth-stacked f32 weights.

    Assumes project_out=True (heads != 1 or dim_head != dim), as in the demo
    config.  mxu_dtype controls the matmul-operand dtype (f32 accumulation).
    """
    B, N, D = x.shape
    depth = params["wqkv"].shape[0]
    inner = heads * dim_head
    mlp = params["w1"].shape[-1]

    if block_b is None:
        block_b = _default_block_b(B)
    assert B % block_b == 0, (B, block_b)
    nb = B // block_b

    # Lane-dense 2-D residual stream; 3-D views only inside the kernel.
    x2 = x.reshape(B * N, D)

    ops = {k: (params[k].astype(mxu_dtype) if k in _MXU_PARAMS else params[k])
           for k in _PARAM_ORDER}

    x_spec = pl.BlockSpec((block_b * N, D), lambda b, d: (b, 0))
    w_specs = [pl.BlockSpec((1,) + ops[k].shape[1:], lambda b, d: (d, 0, 0))
               for k in _PARAM_ORDER]

    if vmem_limit_bytes is None:
        # Per-generation VMEM budget: ~48 MiB on v7x (64 MiB physical),
        # 96 MiB on v5e/v6e (128 MiB physical).
        try:
            cap = int(getattr(pltpu.get_tpu_info(), "vmem_capacity_bytes",
                              128 * 1024 * 1024))
        except Exception:
            cap = 128 * 1024 * 1024
        vmem_limit_bytes = min(96 * 1024 * 1024, (cap * 3) // 4)

    tokens = B * N
    flops = depth * tokens * (2 * D * 3 * inner + 4 * N * inner
                              + 2 * inner * D + 4 * D * mlp)
    transcendentals = depth * tokens * (heads * N + mlp + 2)
    param_bytes = sum(int(v.size) * v.dtype.itemsize for v in ops.values())
    bytes_accessed = 2 * int(x.size) * x.dtype.itemsize + nb * param_bytes

    kernel = functools.partial(transformer_kernel, heads=heads,
                               dim_head=dim_head, seq_len=N)

    out = pl.pallas_call(
        kernel,
        out_shape=jax.ShapeDtypeStruct((B * N, D), x.dtype),
        grid_spec=pltpu.PrefetchScalarGridSpec(
            num_scalar_prefetch=0,
            grid=(nb, depth),
            in_specs=[x_spec] + w_specs,
            out_specs=x_spec,
        ),
        input_output_aliases={0: 0},   # residual stream updated in place in HBM
        compiler_params=pltpu.CompilerParams(
            dimension_semantics=("parallel", "arbitrary"),
            vmem_limit_bytes=int(vmem_limit_bytes),
        ),
        cost_estimate=pl.CostEstimate(flops=int(flops),
                                      transcendentals=int(transcendentals),
                                      bytes_accessed=int(bytes_accessed)),
    )(x2, *[ops[k] for k in _PARAM_ORDER])
    return out.reshape(B, N, D)


def init_params(key, *, depth, dim, heads, dim_head, mlp_dim):
    inner = heads * dim_head

    def linear_w(k, fan_in, fan_out):
        bound = 1.0 / math.sqrt(fan_in)
        return jax.random.uniform(k, (fan_in, fan_out), jnp.float32, -bound, bound)

    def linear_b(k, fan_in, fan_out):
        bound = 1.0 / math.sqrt(fan_in)
        return jax.random.uniform(k, (1, fan_out), jnp.float32, -bound, bound)

    layers = {name: [] for name in _PARAM_ORDER}
    keys = jax.random.split(key, depth)
    for d in range(depth):
        ks = jax.random.split(keys[d], 7)
        layers["ln1w"].append(jnp.ones((1, dim), jnp.float32))   # LayerNorm defaults
        layers["ln1b"].append(jnp.zeros((1, dim), jnp.float32))
        layers["wqkv"].append(linear_w(ks[0], dim, 3 * inner))   # to_qkv, bias=False
        layers["wout"].append(linear_w(ks[1], inner, dim))       # to_out Linear
        layers["bout"].append(linear_b(ks[2], inner, dim))
        layers["ln2w"].append(jnp.ones((1, dim), jnp.float32))
        layers["ln2b"].append(jnp.zeros((1, dim), jnp.float32))
        layers["w1"].append(linear_w(ks[3], dim, mlp_dim))
        layers["b1"].append(linear_b(ks[4], dim, mlp_dim))
        layers["w2"].append(linear_w(ks[5], mlp_dim, dim))
        layers["b2"].append(linear_b(ks[6], mlp_dim, dim))
    return {name: jnp.stack(vals, axis=0) for name, vals in layers.items()}


def transformer_ref(x, p, *, heads, dim_head):
    """Pure-JAX reference of the PyTorch forward (eval mode)."""
    depth = p["wqkv"].shape[0]
    inner = heads * dim_head
    scale = dim_head ** -0.5
    hi = jax.lax.Precision.HIGHEST

    def ln(v, w, b):
        mu = jnp.mean(v, axis=-1, keepdims=True)
        var = jnp.mean(jnp.square(v - mu), axis=-1, keepdims=True)
        return (v - mu) / jnp.sqrt(var + 1e-5) * w + b

    B, N, D = x.shape
    for d in range(depth):
        xn = ln(x, p["ln1w"][d], p["ln1b"][d])
        qkv = jnp.einsum('bnd,de->bne', xn, p["wqkv"][d], precision=hi)
        q, k, v = jnp.split(qkv, 3, axis=-1)
        q = q.reshape(B, N, heads, dim_head).transpose(0, 2, 1, 3)
        k = k.reshape(B, N, heads, dim_head).transpose(0, 2, 1, 3)
        v = v.reshape(B, N, heads, dim_head).transpose(0, 2, 1, 3)
        dots = jnp.einsum('bhqd,bhkd->bhqk', q, k, precision=hi) * scale
        attn = jax.nn.softmax(dots, axis=-1)
        o = jnp.einsum('bhqk,bhkd->bhqd', attn, v, precision=hi)
        o = o.transpose(0, 2, 1, 3).reshape(B, N, inner)
        o = jnp.einsum('bne,ed->bnd', o, p["wout"][d], precision=hi) + p["bout"][d]
        x = x + o
        xn2 = ln(x, p["ln2w"][d], p["ln2b"][d])
        h = jnp.einsum('bnd,dh->bnh', xn2, p["w1"][d], precision=hi) + p["b1"][d]
        h = jax.nn.gelu(h, approximate=False)
        o2 = jnp.einsum('bnh,hd->bnd', h, p["w2"][d], precision=hi) + p["b2"][d]
        x = x + o2
    return x


if __name__ == "__main__":
    key = jax.random.PRNGKey(0)
    k_x, k_p = jax.random.split(key)

    B, N, dim = 2, 8, 32
    depth, heads, dim_head, mlp_dim = 2, 4, 8, 64

    x = jax.random.normal(k_x, (B, N, dim), jnp.float32)
    params = init_params(k_p, depth=depth, dim=dim, heads=heads,
                         dim_head=dim_head, mlp_dim=mlp_dim)

    # Reference first (kernel input may be donated via input_output_aliases).
    ref = transformer_ref(x, params, heads=heads, dim_head=dim_head)

    # f32 MXU operands: tight check of the kernel semantics.
    out_f32 = transformer_forward(x, params, heads=heads, dim_head=dim_head,
                                  mxu_dtype=jnp.float32)
    out_f32 = jax.block_until_ready(out_f32)
    assert out_f32.shape == (B, N, dim), out_f32.shape
    err_f32 = float(jnp.max(jnp.abs(out_f32 - ref)))
    assert err_f32 < 1e-2, err_f32

    # bf16 MXU operands (f32 accumulation): the performance configuration.
    out_bf16 = transformer_forward(x, params, heads=heads, dim_head=dim_head,
                                   mxu_dtype=jnp.bfloat16)
    out_bf16 = jax.block_until_ready(out_bf16)
    assert out_bf16.shape == (B, N, dim), out_bf16.shape
    err_bf16 = float(jnp.max(jnp.abs(out_bf16 - ref)))
    assert err_bf16 < 5e-2, err_bf16

    print("KERNEL_OK")
</pallas_src>

<mosaic_0001>
module attributes {stable_mosaic.version = 11 : i64} {
  func.func @transformer_kernel(%arg0: i32, %arg1: i32, %arg2: memref<8x32xf32, #tpu.memory_space<vmem>>, %arg3: memref<1x1x32xf32, #tpu.memory_space<vmem>>, %arg4: memref<1x1x32xf32, #tpu.memory_space<vmem>>, %arg5: memref<1x32x96xf32, #tpu.memory_space<vmem>>, %arg6: memref<1x32x32xf32, #tpu.memory_space<vmem>>, %arg7: memref<1x1x32xf32, #tpu.memory_space<vmem>>, %arg8: memref<1x1x32xf32, #tpu.memory_space<vmem>>, %arg9: memref<1x1x32xf32, #tpu.memory_space<vmem>>, %arg10: memref<1x32x64xf32, #tpu.memory_space<vmem>>, %arg11: memref<1x1x64xf32, #tpu.memory_space<vmem>>, %arg12: memref<1x64x32xf32, #tpu.memory_space<vmem>>, %arg13: memref<1x1x32xf32, #tpu.memory_space<vmem>>, %arg14: memref<8x32xf32, #tpu.memory_space<vmem>>) attributes {dimension_semantics = [#tpu.dimension_semantics<parallel>, #tpu.dimension_semantics<arbitrary>], iteration_bounds = array<i64: 2, 2>, scalar_prefetch = 0 : i64, scratch_operands = 0 : i64, tpu.core_type = #tpu.core_type<tc>, window_params = [{transform_indices = @transform_0, window_bounds = array<i64: 8, 32>}, {transform_indices = @transform_1, window_bounds = array<i64: 1, 1, 32>}, {transform_indices = @transform_2, window_bounds = array<i64: 1, 1, 32>}, {transform_indices = @transform_3, window_bounds = array<i64: 1, 32, 96>}, {transform_indices = @transform_4, window_bounds = array<i64: 1, 32, 32>}, {transform_indices = @transform_5, window_bounds = array<i64: 1, 1, 32>}, {transform_indices = @transform_6, window_bounds = array<i64: 1, 1, 32>}, {transform_indices = @transform_7, window_bounds = array<i64: 1, 1, 32>}, {transform_indices = @transform_8, window_bounds = array<i64: 1, 32, 64>}, {transform_indices = @transform_9, window_bounds = array<i64: 1, 1, 64>}, {transform_indices = @transform_10, window_bounds = array<i64: 1, 64, 32>}, {transform_indices = @transform_11, window_bounds = array<i64: 1, 1, 32>}, {transform_indices = @transform_12, window_bounds = array<i64: 8, 32>}]} {
    %c0_i32 = arith.constant 0 : i32
    %0 = arith.cmpi eq, %arg1, %c0_i32 : i32
    %1 = arith.extui %0 : i1 to i32
    %c0_i32_0 = arith.constant 0 : i32
    %2 = arith.cmpi ne, %1, %c0_i32_0 : i32
    scf.if %2 {
      %c0_84 = arith.constant 0 : index
      %c0_85 = arith.constant 0 : index
      %193 = vector.load %arg2[%c0_84, %c0_85] : memref<8x32xf32, #tpu.memory_space<vmem>>, vector<8x32xf32>
      %c0_86 = arith.constant 0 : index
      %c0_87 = arith.constant 0 : index
      %194 = vector.load %arg14[%c0_86, %c0_87] : memref<8x32xf32, #tpu.memory_space<vmem>>, vector<8x32xf32>
      tpu.vector_store %arg14[%c0_86, %c0_87], %193 {strides = array<i32>} : memref<8x32xf32, #tpu.memory_space<vmem>>, vector<8x32xf32>,
    } else {
    }
    %c0 = arith.constant 0 : index
    %c0_1 = arith.constant 0 : index
    %3 = vector.load %arg14[%c0, %c0_1] : memref<8x32xf32, #tpu.memory_space<vmem>>, vector<8x32xf32>
    %c0_2 = arith.constant 0 : index
    %c0_3 = arith.constant 0 : index
    %c0_4 = arith.constant 0 : index
    %4 = vector.load %arg3[%c0_2, %c0_3, %c0_4] : memref<1x1x32xf32, #tpu.memory_space<vmem>>, vector<1x1x32xf32>
    %5 = vector.shape_cast %4 : vector<1x1x32xf32> to vector<1x32xf32>
    %c0_5 = arith.constant 0 : index
    %c0_6 = arith.constant 0 : index
    %c0_7 = arith.constant 0 : index
    %6 = vector.load %arg4[%c0_5, %c0_6, %c0_7] : memref<1x1x32xf32, #tpu.memory_space<vmem>>, vector<1x1x32xf32>
    %7 = vector.shape_cast %6 : vector<1x1x32xf32> to vector<1x32xf32>
    %cst = arith.constant dense<0.000000e+00> : vector<8xf32>
    %8 = vector.multi_reduction <add>, %3, %cst [1] : vector<8x32xf32> to vector<8xf32>
    %9 = vector.shape_cast %8 : vector<8xf32> to vector<8x1xf32>
    %cst_8 = arith.constant 3.200000e+01 : f32
    %10 = vector.broadcast %cst_8 : f32 to vector<8x1xf32>
    %11 = arith.divf %9, %10 : vector<8x1xf32>
    %12 = vector.broadcast %11 : vector<8x1xf32> to vector<8x32xf32>
    %13 = arith.subf %3, %12 : vector<8x32xf32>
    %14 = arith.mulf %13, %13 : vector<8x32xf32>
    %cst_9 = arith.constant dense<0.000000e+00> : vector<8xf32>
    %15 = vector.multi_reduction <add>, %14, %cst_9 [1] : vector<8x32xf32> to vector<8xf32>
    %16 = vector.shape_cast %15 : vector<8xf32> to vector<8x1xf32>
    %cst_10 = arith.constant 3.200000e+01 : f32
    %17 = vector.broadcast %cst_10 : f32 to vector<8x1xf32>
    %18 = arith.divf %16, %17 : vector<8x1xf32>
    %19 = vector.broadcast %11 : vector<8x1xf32> to vector<8x32xf32>
    %20 = arith.subf %3, %19 : vector<8x32xf32>
    %cst_11 = arith.constant 9.99999974E-6 : f32
    %21 = vector.broadcast %cst_11 : f32 to vector<8x1xf32>
    %22 = arith.addf %18, %21 : vector<8x1xf32>
    %23 = math.rsqrt %22 : vector<8x1xf32>
    %24 = vector.broadcast %23 : vector<8x1xf32> to vector<8x32xf32>
    %25 = arith.mulf %20, %24 : vector<8x32xf32>
    %26 = vector.broadcast %5 : vector<1x32xf32> to vector<8x32xf32>
    %27 = arith.mulf %25, %26 : vector<8x32xf32>
    %28 = vector.broadcast %7 : vector<1x32xf32> to vector<8x32xf32>
    %29 = arith.addf %27, %28 : vector<8x32xf32>
    %c0_12 = arith.constant 0 : index
    %c0_13 = arith.constant 0 : index
    %c0_14 = arith.constant 0 : index
    %30 = vector.load %arg5[%c0_12, %c0_13, %c0_14] : memref<1x32x96xf32, #tpu.memory_space<vmem>>, vector<1x32x96xf32>
    %31 = vector.shape_cast %30 : vector<1x32x96xf32> to vector<32x96xf32>
    %cst_15 = arith.constant dense<0.000000e+00> : vector<8x96xf32>
    %32 = tpu.matmul %29, %31, %cst_15 {dimension_numbers = #tpu.dot_dimension_numbers<[1], [0], [0], [1], [0, 0, 1, 1], [], []>} : vector<8x32xf32>, vector<32x96xf32>, vector<8x96xf32> -> vector<8x96xf32>
    %33 = vector.shape_cast %32 : vector<8x96xf32> to vector<1x8x96xf32>
    %34 = vector.extract_strided_slice %33 {offsets = [0, 0, 0], sizes = [1, 8, 8], strides = [1, 1, 1]} : vector<1x8x96xf32> to vector<1x8x8xf32>
    %35 = vector.extract_strided_slice %33 {offsets = [0, 0, 32], sizes = [1, 8, 8], strides = [1, 1, 1]} : vector<1x8x96xf32> to vector<1x8x8xf32>
    %36 = vector.extract_strided_slice %33 {offsets = [0, 0, 64], sizes = [1, 8, 8], strides = [1, 1, 1]} : vector<1x8x96xf32> to vector<1x8x8xf32>
    "tpu.trace_start"() <{level = 10 : i32, message = "bqd,bkd->bqk"}> : () -> ()
    %cst_16 = arith.constant dense<0.000000e+00> : vector<1x8x8xf32>
    %37 = tpu.matmul %34, %35, %cst_16 {dimension_numbers = #tpu.dot_dimension_numbers<[2], [2], [1], [1], [0, 0, 0, 1, 1, 1], [0], [0]>} : vector<1x8x8xf32>, vector<1x8x8xf32>, vector<1x8x8xf32> -> vector<1x8x8xf32>
    "tpu.trace_stop"() : () -> ()
    %cst_17 = arith.constant 0.353553385 : f32
    %38 = vector.broadcast %cst_17 : f32 to vector<1x8x8xf32>
    %39 = arith.mulf %37, %38 : vector<1x8x8xf32>
    %cst_18 = arith.constant dense<0xFF800000> : vector<1x8xf32>
    %40 = vector.multi_reduction <maximumf>, %39, %cst_18 [2] : vector<1x8x8xf32> to vector<1x8xf32>
    %41 = vector.shape_cast %40 : vector<1x8xf32> to vector<1x8x1xf32>
    %42 = vector.broadcast %41 : vector<1x8x1xf32> to vector<1x8x8xf32>
    %43 = arith.subf %39, %42 : vector<1x8x8xf32>
    %44 = math.exp %43 : vector<1x8x8xf32>
    %cst_19 = arith.constant dense<0.000000e+00> : vector<1x8xf32>
    %45 = vector.multi_reduction <add>, %44, %cst_19 [2] : vector<1x8x8xf32> to vector<1x8xf32>
    %46 = vector.shape_cast %45 : vector<1x8xf32> to vector<1x8x1xf32>
    %47 = tpu.reciprocal %46 {approx = true} : vector<1x8x1xf32> -> vector<1x8x1xf32>
    %48 = vector.broadcast %47 : vector<1x8x1xf32> to vector<1x8x8xf32>
    %49 = arith.mulf %44, %48 : vector<1x8x8xf32>
    "tpu.trace_start"() <{level = 10 : i32, message = "bqk,bkd->bqd"}> : () -> ()
    %cst_20 = arith.constant dense<0.000000e+00> : vector<1x8x8xf32>
    %50 = tpu.matmul %49, %36, %cst_20 {dimension_numbers = #tpu.dot_dimension_numbers<[2], [1], [1], [2], [0, 0, 0, 1, 1, 2], [0], [0]>} : vector<1x8x8xf32>, vector<1x8x8xf32>, vector<1x8x8xf32> -> vector<1x8x8xf32>
    "tpu.trace_stop"() : () -> ()
    %51 = vector.extract_strided_slice %33 {offsets = [0, 0, 8], sizes = [1, 8, 8], strides = [1, 1, 1]} : vector<1x8x96xf32> to vector<1x8x8xf32>
    %52 = vector.extract_strided_slice %33 {offsets = [0, 0, 40], sizes = [1, 8, 8], strides = [1, 1, 1]} : vector<1x8x96xf32> to vector<1x8x8xf32>
    %53 = vector.extract_strided_slice %33 {offsets = [0, 0, 72], sizes = [1, 8, 8], strides = [1, 1, 1]} : vector<1x8x96xf32> to vector<1x8x8xf32>
    "tpu.trace_start"() <{level = 10 : i32, message = "bqd,bkd->bqk"}> : () -> ()
    %cst_21 = arith.constant dense<0.000000e+00> : vector<1x8x8xf32>
    %54 = tpu.matmul %51, %52, %cst_21 {dimension_numbers = #tpu.dot_dimension_numbers<[2], [2], [1], [1], [0, 0, 0, 1, 1, 1], [0], [0]>} : vector<1x8x8xf32>, vector<1x8x8xf32>, vector<1x8x8xf32> -> vector<1x8x8xf32>
    "tpu.trace_stop"() : () -> ()
    %cst_22 = arith.constant 0.353553385 : f32
    %55 = vector.broadcast %cst_22 : f32 to vector<1x8x8xf32>
    %56 = arith.mulf %54, %55 : vector<1x8x8xf32>
    %cst_23 = arith.constant dense<0xFF800000> : vector<1x8xf32>
    %57 = vector.multi_reduction <maximumf>, %56, %cst_23 [2] : vector<1x8x8xf32> to vector<1x8xf32>
    %58 = vector.shape_cast %57 : vector<1x8xf32> to vector<1x8x1xf32>
    %59 = vector.broadcast %58 : vector<1x8x1xf32> to vector<1x8x8xf32>
    %60 = arith.subf %56, %59 : vector<1x8x8xf32>
    %61 = math.exp %60 : vector<1x8x8xf32>
    %cst_24 = arith.constant dense<0.000000e+00> : vector<1x8xf32>
    %62 = vector.multi_reduction <add>, %61, %cst_24 [2] : vector<1x8x8xf32> to vector<1x8xf32>
    %63 = vector.shape_cast %62 : vector<1x8xf32> to vector<1x8x1xf32>
    %64 = tpu.reciprocal %63 {approx = true} : vector<1x8x1xf32> -> vector<1x8x1xf32>
    %65 = vector.broadcast %64 : vector<1x8x1xf32> to vector<1x8x8xf32>
    %66 = arith.mulf %61, %65 : vector<1x8x8xf32>
    "tpu.trace_start"() <{level = 10 : i32, message = "bqk,bkd->bqd"}> : () -> ()
    %cst_25 = arith.constant dense<0.000000e+00> : vector<1x8x8xf32>
    %67 = tpu.matmul %66, %53, %cst_25 {dimension_numbers = #tpu.dot_dimension_numbers<[2], [1], [1], [2], [0, 0, 0, 1, 1, 2], [0], [0]>} : vector<1x8x8xf32>, vector<1x8x8xf32>, vector<1x8x8xf32> -> vector<1x8x8xf32>
    "tpu.trace_stop"() : () -> ()
    %68 = vector.extract_strided_slice %33 {offsets = [0, 0, 16], sizes = [1, 8, 8], strides = [1, 1, 1]} : vector<1x8x96xf32> to vector<1x8x8xf32>
    %69 = vector.extract_strided_slice %33 {offsets = [0, 0, 48], sizes = [1, 8, 8], strides = [1, 1, 1]} : vector<1x8x96xf32> to vector<1x8x8xf32>
    %70 = vector.extract_strided_slice %33 {offsets = [0, 0, 80], sizes = [1, 8, 8], strides = [1, 1, 1]} : vector<1x8x96xf32> to vector<1x8x8xf32>
    "tpu.trace_start"() <{level = 10 : i32, message = "bqd,bkd->bqk"}> : () -> ()
    %cst_26 = arith.constant dense<0.000000e+00> : vector<1x8x8xf32>
    %71 = tpu.matmul %68, %69, %cst_26 {dimension_numbers = #tpu.dot_dimension_numbers<[2], [2], [1], [1], [0, 0, 0, 1, 1, 1], [0], [0]>} : vector<1x8x8xf32>, vector<1x8x8xf32>, vector<1x8x8xf32> -> vector<1x8x8xf32>
    "tpu.trace_stop"() : () -> ()
    %cst_27 = arith.constant 0.353553385 : f32
    %72 = vector.broadcast %cst_27 : f32 to vector<1x8x8xf32>
    %73 = arith.mulf %71, %72 : vector<1x8x8xf32>
    %cst_28 = arith.constant dense<0xFF800000> : vector<1x8xf32>
    %74 = vector.multi_reduction <maximumf>, %73, %cst_28 [2] : vector<1x8x8xf32> to vector<1x8xf32>
    %75 = vector.shape_cast %74 : vector<1x8xf32> to vector<1x8x1xf32>
    %76 = vector.broadcast %75 : vector<1x8x1xf32> to vector<1x8x8xf32>
    %77 = arith.subf %73, %76 : vector<1x8x8xf32>
    %78 = math.exp %77 : vector<1x8x8xf32>
    %cst_29 = arith.constant dense<0.000000e+00> : vector<1x8xf32>
    %79 = vector.multi_reduction <add>, %78, %cst_29 [2] : vector<1x8x8xf32> to vector<1x8xf32>
    %80 = vector.shape_cast %79 : vector<1x8xf32> to vector<1x8x1xf32>
    %81 = tpu.reciprocal %80 {approx = true} : vector<1x8x1xf32> -> vector<1x8x1xf32>
    %82 = vector.broadcast %81 : vector<1x8x1xf32> to vector<1x8x8xf32>
    %83 = arith.mulf %78, %82 : vector<1x8x8xf32>
    "tpu.trace_start"() <{level = 10 : i32, message = "bqk,bkd->bqd"}> : () -> ()
    %cst_30 = arith.constant dense<0.000000e+00> : vector<1x8x8xf32>
    %84 = tpu.matmul %83, %70, %cst_30 {dimension_numbers = #tpu.dot_dimension_numbers<[2], [1], [1], [2], [0, 0, 0, 1, 1, 2], [0], [0]>} : vector<1x8x8xf32>, vector<1x8x8xf32>, vector<1x8x8xf32> -> vector<1x8x8xf32>
    "tpu.trace_stop"() : () -> ()
    %85 = vector.extract_strided_slice %33 {offsets = [0, 0, 24], sizes = [1, 8, 8], strides = [1, 1, 1]} : vector<1x8x96xf32> to vector<1x8x8xf32>
    %86 = vector.extract_strided_slice %33 {offsets = [0, 0, 56], sizes = [1, 8, 8], strides = [1, 1, 1]} : vector<1x8x96xf32> to vector<1x8x8xf32>
    %87 = vector.extract_strided_slice %33 {offsets = [0, 0, 88], sizes = [1, 8, 8], strides = [1, 1, 1]} : vector<1x8x96xf32> to vector<1x8x8xf32>
    "tpu.trace_start"() <{level = 10 : i32, message = "bqd,bkd->bqk"}> : () -> ()
    %cst_31 = arith.constant dense<0.000000e+00> : vector<1x8x8xf32>
    %88 = tpu.matmul %85, %86, %cst_31 {dimension_numbers = #tpu.dot_dimension_numbers<[2], [2], [1], [1], [0, 0, 0, 1, 1, 1], [0], [0]>} : vector<1x8x8xf32>, vector<1x8x8xf32>, vector<1x8x8xf32> -> vector<1x8x8xf32>
    "tpu.trace_stop"() : () -> ()
    %cst_32 = arith.constant 0.353553385 : f32
    %89 = vector.broadcast %cst_32 : f32 to vector<1x8x8xf32>
    %90 = arith.mulf %88, %89 : vector<1x8x8xf32>
    %cst_33 = arith.constant dense<0xFF800000> : vector<1x8xf32>
    %91 = vector.multi_reduction <maximumf>, %90, %cst_33 [2] : vector<1x8x8xf32> to vector<1x8xf32>
    %92 = vector.shape_cast %91 : vector<1x8xf32> to vector<1x8x1xf32>
    %93 = vector.broadcast %92 : vector<1x8x1xf32> to vector<1x8x8xf32>
    %94 = arith.subf %90, %93 : vector<1x8x8xf32>
    %95 = math.exp %94 : vector<1x8x8xf32>
    %cst_34 = arith.constant dense<0.000000e+00> : vector<1x8xf32>
    %96 = vector.multi_reduction <add>, %95, %cst_34 [2] : vector<1x8x8xf32> to vector<1x8xf32>
    %97 = vector.shape_cast %96 : vector<1x8xf32> to vector<1x8x1xf32>
    %98 = tpu.reciprocal %97 {approx = true} : vector<1x8x1xf32> -> vector<1x8x1xf32>
    %99 = vector.broadcast %98 : vector<1x8x1xf32> to vector<1x8x8xf32>
    %100 = arith.mulf %95, %99 : vector<1x8x8xf32>
    "tpu.trace_start"() <{level = 10 : i32, message = "bqk,bkd->bqd"}> : () -> ()
    %cst_35 = arith.constant dense<0.000000e+00> : vector<1x8x8xf32>
    %101 = tpu.matmul %100, %87, %cst_35 {dimension_numbers = #tpu.dot_dimension_numbers<[2], [1], [1], [2], [0, 0, 0, 1, 1, 2], [0], [0]>} : vector<1x8x8xf32>, vector<1x8x8xf32>, vector<1x8x8xf32> -> vector<1x8x8xf32>
    "tpu.trace_stop"() : () -> ()
    %102 = tpu.concatenate %50, %67, %84, %101 in 2 : vector<1x8x8xf32>, vector<1x8x8xf32>, vector<1x8x8xf32>, vector<1x8x8xf32> -> vector<1x8x32xf32>
    %103 = vector.shape_cast %102 : vector<1x8x32xf32> to vector<8x32xf32>
    %c0_36 = arith.constant 0 : index
    %c0_37 = arith.constant 0 : index
    %c0_38 = arith.constant 0 : index
    %104 = vector.load %arg6[%c0_36, %c0_37, %c0_38] : memref<1x32x32xf32, #tpu.memory_space<vmem>>, vector<1x32x32xf32>
    %105 = vector.shape_cast %104 : vector<1x32x32xf32> to vector<32x32xf32>
    %cst_39 = arith.constant dense<0.000000e+00> : vector<8x32xf32>
    %106 = tpu.matmul %103, %105, %cst_39 {dimension_numbers = #tpu.dot_dimension_numbers<[1], [0], [0], [1], [0, 0, 1, 1], [], []>} : vector<8x32xf32>, vector<32x32xf32>, vector<8x32xf32> -> vector<8x32xf32>
    %107 = arith.addf %3, %106 : vector<8x32xf32>
    %c0_40 = arith.constant 0 : index
    %c0_41 = arith.constant 0 : index
    %c0_42 = arith.constant 0 : index
    %108 = vector.load %arg7[%c0_40, %c0_41, %c0_42] : memref<1x1x32xf32, #tpu.memory_space<vmem>>, vector<1x1x32xf32>
    %109 = vector.shape_cast %108 : vector<1x1x32xf32> to vector<1x32xf32>
    %110 = vector.broadcast %109 : vector<1x32xf32> to vector<8x32xf32>
    %111 = arith.addf %107, %110 : vector<8x32xf32>
    %c0_43 = arith.constant 0 : index
    %c0_44 = arith.constant 0 : index
    %c0_45 = arith.constant 0 : index
    %112 = vector.load %arg8[%c0_43, %c0_44, %c0_45] : memref<1x1x32xf32, #tpu.memory_space<vmem>>, vector<1x1x32xf32>
    %113 = vector.shape_cast %112 : vector<1x1x32xf32> to vector<1x32xf32>
    %c0_46 = arith.constant 0 : index
    %c0_47 = arith.constant 0 : index
    %c0_48 = arith.constant 0 : index
    %114 = vector.load %arg9[%c0_46, %c0_47, %c0_48] : memref<1x1x32xf32, #tpu.memory_space<vmem>>, vector<1x1x32xf32>
    %115 = vector.shape_cast %114 : vector<1x1x32xf32> to vector<1x32xf32>
    %cst_49 = arith.constant dense<0.000000e+00> : vector<8xf32>
    %116 = vector.multi_reduction <add>, %111, %cst_49 [1] : vector<8x32xf32> to vector<8xf32>
    %117 = vector.shape_cast %116 : vector<8xf32> to vector<8x1xf32>
    %cst_50 = arith.constant 3.200000e+01 : f32
    %118 = vector.broadcast %cst_50 : f32 to vector<8x1xf32>
    %119 = arith.divf %117, %118 : vector<8x1xf32>
    %120 = vector.broadcast %119 : vector<8x1xf32> to vector<8x32xf32>
    %121 = arith.subf %111, %120 : vector<8x32xf32>
    %122 = arith.mulf %121, %121 : vector<8x32xf32>
    %cst_51 = arith.constant dense<0.000000e+00> : vector<8xf32>
    %123 = vector.multi_reduction <add>, %122, %cst_51 [1] : vector<8x32xf32> to vector<8xf32>
    %124 = vector.shape_cast %123 : vector<8xf32> to vector<8x1xf32>
    %cst_52 = arith.constant 3.200000e+01 : f32
    %125 = vector.broadcast %cst_52 : f32 to vector<8x1xf32>
    %126 = arith.divf %124, %125 : vector<8x1xf32>
    %127 = vector.broadcast %119 : vector<8x1xf32> to vector<8x32xf32>
    %128 = arith.subf %111, %127 : vector<8x32xf32>
    %cst_53 = arith.constant 9.99999974E-6 : f32
    %129 = vector.broadcast %cst_53 : f32 to vector<8x1xf32>
    %130 = arith.addf %126, %129 : vector<8x1xf32>
    %131 = math.rsqrt %130 : vector<8x1xf32>
    %132 = vector.broadcast %131 : vector<8x1xf32> to vector<8x32xf32>
    %133 = arith.mulf %128, %132 : vector<8x32xf32>
    %134 = vector.broadcast %113 : vector<1x32xf32> to vector<8x32xf32>
    %135 = arith.mulf %133, %134 : vector<8x32xf32>
    %136 = vector.broadcast %115 : vector<1x32xf32> to vector<8x32xf32>
    %137 = arith.addf %135, %136 : vector<8x32xf32>
    %c0_54 = arith.constant 0 : index
    %c0_55 = arith.constant 0 : index
    %c0_56 = arith.constant 0 : index
    %138 = vector.load %arg10[%c0_54, %c0_55, %c0_56] : memref<1x32x64xf32, #tpu.memory_space<vmem>>, vector<1x32x64xf32>
    %139 = vector.shape_cast %138 : vector<1x32x64xf32> to vector<32x64xf32>
    %cst_57 = arith.constant dense<0.000000e+00> : vector<8x64xf32>
    %140 = tpu.matmul %137, %139, %cst_57 {dimension_numbers = #tpu.dot_dimension_numbers<[1], [0], [0], [1], [0, 0, 1, 1], [], []>} : vector<8x32xf32>, vector<32x64xf32>, vector<8x64xf32> -> vector<8x64xf32>
    %c0_58 = arith.constant 0 : index
    %c0_59 = arith.constant 0 : index
    %c0_60 = arith.constant 0 : index
    %141 = vector.load %arg11[%c0_58, %c0_59, %c0_60] : memref<1x1x64xf32, #tpu.memory_space<vmem>>, vector<1x1x64xf32>
    %142 = vector.shape_cast %141 : vector<1x1x64xf32> to vector<1x64xf32>
    %143 = vector.broadcast %142 : vector<1x64xf32> to vector<8x64xf32>
    %144 = arith.addf %140, %143 : vector<8x64xf32>
    %cst_61 = arith.constant 5.000000e-01 : f32
    %145 = vector.broadcast %cst_61 : f32 to vector<8x64xf32>
    %146 = arith.mulf %145, %144 : vector<8x64xf32>
    %cst_62 = arith.constant 0.707106769 : f32
    %147 = vector.broadcast %cst_62 : f32 to vector<8x64xf32>
    %148 = arith.mulf %144, %147 : vector<8x64xf32>
    %149 = math.absf %148 : vector<8x64xf32>
    %cst_63 = arith.constant 0.327591091 : f32
    %150 = vector.broadcast %cst_63 : f32 to vector<8x64xf32>
    %151 = arith.mulf %150, %149 : vector<8x64xf32>
    %cst_64 = arith.constant 1.000000e+00 : f32
    %152 = vector.broadcast %cst_64 : f32 to vector<8x64xf32>
    %153 = arith.addf %152, %151 : vector<8x64xf32>
    %154 = tpu.reciprocal %153 {approx = true} : vector<8x64xf32> -> vector<8x64xf32>
    %cst_65 = arith.constant 1.06140542 : f32
    %155 = vector.broadcast %cst_65 : f32 to vector<8x64xf32>
    %156 = arith.mulf %155, %154 : vector<8x64xf32>
    %cst_66 = arith.constant -1.45315206 : f32
    %157 = vector.broadcast %cst_66 : f32 to vector<8x64xf32>
    %158 = arith.addf %156, %157 : vector<8x64xf32>
    %159 = arith.mulf %158, %154 : vector<8x64xf32>
    %cst_67 = arith.constant 1.42141378 : f32
    %160 = vector.broadcast %cst_67 : f32 to vector<8x64xf32>
    %161 = arith.addf %159, %160 : vector<8x64xf32>
    %162 = arith.mulf %161, %154 : vector<8x64xf32>
    %cst_68 = arith.constant -0.284496725 : f32
    %163 = vector.broadcast %cst_68 : f32 to vector<8x64xf32>
    %164 = arith.addf %162, %163 : vector<8x64xf32>
    %165 = arith.mulf %164, %154 : vector<8x64xf32>
    %cst_69 = arith.constant 0.254829586 : f32
    %166 = vector.broadcast %cst_69 : f32 to vector<8x64xf32>
    %167 = arith.addf %165, %166 : vector<8x64xf32>
    %168 = arith.mulf %167, %154 : vector<8x64xf32>
    %cst_70 = arith.constant 0.000000e+00 : f32
    %169 = vector.broadcast %cst_70 : f32 to vector<8x64xf32>
    %170 = arith.subf %169, %149 : vector<8x64xf32>
    %171 = arith.mulf %170, %149 : vector<8x64xf32>
    %172 = math.exp %171 : vector<8x64xf32>
    %173 = arith.mulf %168, %172 : vector<8x64xf32>
    %cst_71 = arith.constant 1.000000e+00 : f32
    %174 = vector.broadcast %cst_71 : f32 to vector<8x64xf32>
    %175 = arith.subf %174, %173 : vector<8x64xf32>
    %cst_72 = arith.constant 0.000000e+00 : f32
    %176 = vector.broadcast %cst_72 : f32 to vector<8x64xf32>
    %177 = arith.cmpf oge, %148, %176 : vector<8x64xf32>
    %cst_73 = arith.constant 0.000000e+00 : f32
    %178 = vector.broadcast %cst_73 : f32 to vector<8x64xf32>
    %179 = arith.subf %178, %175 : vector<8x64xf32>
    %180 = arith.select %177, %175, %179 : vector<8x64xi1>, vector<8x64xf32>
    %cst_74 = arith.constant 1.000000e+00 : f32
    %181 = vector.broadcast %cst_74 : f32 to vector<8x64xf32>
    %182 = arith.addf %181, %180 : vector<8x64xf32>
    %183 = arith.mulf %146, %182 : vector<8x64xf32>
    %c0_75 = arith.constant 0 : index
    %c0_76 = arith.constant 0 : index
    %c0_77 = arith.constant 0 : index
    %184 = vector.load %arg12[%c0_75, %c0_76, %c0_77] : memref<1x64x32xf32, #tpu.memory_space<vmem>>, vector<1x64x32xf32>
    %185 = vector.shape_cast %184 : vector<1x64x32xf32> to vector<64x32xf32>
    %cst_78 = arith.constant dense<0.000000e+00> : vector<8x32xf32>
    %186 = tpu.matmul %183, %185, %cst_78 {dimension_numbers = #tpu.dot_dimension_numbers<[1], [0], [0], [1], [0, 0, 1, 1], [], []>} : vector<8x64xf32>, vector<64x32xf32>, vector<8x32xf32> -> vector<8x32xf32>
    %c0_79 = arith.constant 0 : index
    %c0_80 = arith.constant 0 : index
    %c0_81 = arith.constant 0 : index
    %187 = vector.load %arg13[%c0_79, %c0_80, %c0_81] : memref<1x1x32xf32, #tpu.memory_space<vmem>>, vector<1x1x32xf32>
    %188 = vector.shape_cast %187 : vector<1x1x32xf32> to vector<1x32xf32>
    %189 = vector.broadcast %188 : vector<1x32xf32> to vector<8x32xf32>
    %190 = arith.addf %186, %189 : vector<8x32xf32>
    %191 = arith.addf %111, %190 : vector<8x32xf32>
    %c0_82 = arith.constant 0 : index
    %c0_83 = arith.constant 0 : index
    %192 = vector.load %arg14[%c0_82, %c0_83] : memref<8x32xf32, #tpu.memory_space<vmem>>, vector<8x32xf32>
    tpu.vector_store %arg14[%c0_82, %c0_83], %191 {strides = array<i32>} : memref<8x32xf32, #tpu.memory_space<vmem>>, vector<8x32xf32>,
    return
  }
  func.func @transform_0(%arg0: i32, %arg1: i32) -> (i32, i32) {
    %c0_i32 = arith.constant 0 : i32
    %c0_i32_0 = arith.constant 0 : i32
    return %arg0, %c0_i32 : i32, i32
  }
  func.func @transform_1(%arg0: i32, %arg1: i32) -> (i32, i32, i32) {
    %c0_i32 = arith.constant 0 : i32
    %c0_i32_0 = arith.constant 0 : i32
    %c0_i32_1 = arith.constant 0 : i32
    return %arg1, %c0_i32, %c0_i32_0 : i32, i32, i32
  }
  func.func @transform_2(%arg0: i32, %arg1: i32) -> (i32, i32, i32) {
    %c0_i32 = arith.constant 0 : i32
    %c0_i32_0 = arith.constant 0 : i32
    %c0_i32_1 = arith.constant 0 : i32
    return %arg1, %c0_i32, %c0_i32_0 : i32, i32, i32
  }
  func.func @transform_3(%arg0: i32, %arg1: i32) -> (i32, i32, i32) {
    %c0_i32 = arith.constant 0 : i32
    %c0_i32_0 = arith.constant 0 : i32
    %c0_i32_1 = arith.constant 0 : i32
    return %arg1, %c0_i32, %c0_i32_0 : i32, i32, i32
  }
  func.func @transform_4(%arg0: i32, %arg1: i32) -> (i32, i32, i32) {
    %c0_i32 = arith.constant 0 : i32
    %c0_i32_0 = arith.constant 0 : i32
    %c0_i32_1 = arith.constant 0 : i32
    return %arg1, %c0_i32, %c0_i32_0 : i32, i32, i32
  }
  func.func @transform_5(%arg0: i32, %arg1: i32) -> (i32, i32, i32) {
    %c0_i32 = arith.constant 0 : i32
    %c0_i32_0 = arith.constant 0 : i32
    %c0_i32_1 = arith.constant 0 : i32
    return %arg1, %c0_i32, %c0_i32_0 : i32, i32, i32
  }
  func.func @transform_6(%arg0: i32, %arg1: i32) -> (i32, i32, i32) {
    %c0_i32 = arith.constant 0 : i32
    %c0_i32_0 = arith.constant 0 : i32
    %c0_i32_1 = arith.constant 0 : i32
    return %arg1, %c0_i32, %c0_i32_0 : i32, i32, i32
  }
  func.func @transform_7(%arg0: i32, %arg1: i32) -> (i32, i32, i32) {
    %c0_i32 = arith.constant 0 : i32
    %c0_i32_0 = arith.constant 0 : i32
    %c0_i32_1 = arith.constant 0 : i32
    return %arg1, %c0_i32, %c0_i32_0 : i32, i32, i32
  }
  func.func @transform_8(%arg0: i32, %arg1: i32) -> (i32, i32, i32) {
    %c0_i32 = arith.constant 0 : i32
    %c0_i32_0 = arith.constant 0 : i32
    %c0_i32_1 = arith.constant 0 : i32
    return %arg1, %c0_i32, %c0_i32_0 : i32, i32, i32
  }
  func.func @transform_9(%arg0: i32, %arg1: i32) -> (i32, i32, i32) {
    %c0_i32 = arith.constant 0 : i32
    %c0_i32_0 = arith.constant 0 : i32
    %c0_i32_1 = arith.constant 0 : i32
    return %arg1, %c0_i32, %c0_i32_0 : i32, i32, i32
  }
  func.func @transform_10(%arg0: i32, %arg1: i32) -> (i32, i32, i32) {
    %c0_i32 = arith.constant 0 : i32
    %c0_i32_0 = arith.constant 0 : i32
    %c0_i32_1 = arith.constant 0 : i32
    return %arg1, %c0_i32, %c0_i32_0 : i32, i32, i32
  }
  func.func @transform_11(%arg0: i32, %arg1: i32) -> (i32, i32, i32) {
    %c0_i32 = arith.constant 0 : i32
    %c0_i32_0 = arith.constant 0 : i32
    %c0_i32_1 = arith.constant 0 : i32
    return %arg1, %c0_i32, %c0_i32_0 : i32, i32, i32
  }
  func.func @transform_12(%arg0: i32, %arg1: i32) -> (i32, i32) {
    %c0_i32 = arith.constant 0 : i32
    %c0_i32_0 = arith.constant 0 : i32
    return %arg0, %c0_i32 : i32, i32
  }
}

</mosaic_0001>

<llo_original>
// kernel: tpu_custom_call.1
$region0: #{tpu_custom_call.1}
  #allocation0 [shape = 'u32[]', space=smem, size = 0x4, offset = 0x4, fixed_abs, tag = 'smem constant byte address 0x4 - core index']
  #allocation1 [shape = 'u32[72,128]{1,0:T(1,128)}', space=vmem, size = 0x9000, scoped, tag = 'internal scratch']
  %s0 = inlined_call_operand.hbm [shape: f32[16,32], index: 0, kind: input, shape index: {}, may-alias: {0,12}]
  %s1 = inlined_call_operand.vmem [shape: f32[2,1,32], index: 1, kind: input, shape index: {}]
  %s2 = inlined_call_operand.vmem [shape: f32[2,1,32], index: 2, kind: input, shape index: {}]
  %s3 = inlined_call_operand.vmem [shape: f32[2,32,96], index: 3, kind: input, shape index: {}]
  %s4 = inlined_call_operand.vmem [shape: f32[2,32,32], index: 4, kind: input, shape index: {}]
  %s5 = inlined_call_operand.vmem [shape: f32[2,1,32], index: 5, kind: input, shape index: {}]
  %s6 = inlined_call_operand.vmem [shape: f32[2,1,32], index: 6, kind: input, shape index: {}]
  %s7 = inlined_call_operand.vmem [shape: f32[2,1,32], index: 7, kind: input, shape index: {}]
  %s8 = inlined_call_operand.vmem [shape: f32[2,32,64], index: 8, kind: input, shape index: {}]
  %s9 = inlined_call_operand.vmem [shape: f32[2,1,64], index: 9, kind: input, shape index: {}]
  %s10 = inlined_call_operand.vmem [shape: f32[2,64,32], index: 10, kind: input, shape index: {}]
  %s11 = inlined_call_operand.vmem [shape: f32[2,1,32], index: 11, kind: input, shape index: {}]
  %s12 = inlined_call_operand.hbm [shape: f32[16,32], index: 12, kind: output, shape index: {}, may-alias: {0,12}]
  %s13 = sld [smem:[#allocation0]]
  $region89: #{tpu_custom_call.1} parent=0
    _
  %s15 = ssub.s32 1, %s13
  %s16 = scalar_select 0, %s15, %s13
  $region1: #{tpu_custom_call.1} parent=0
    #allocation2 [shape = 'u8[8192]{0}', space=vmem, size = 0x2000, scoped, tag = 'input window, operand 0']
    #allocation3 [shape = 's32[2]{0}', space=sflag, size = 0x8, scoped, tag = 'scoped memory for tpu_custom_call.1']
    #allocation4 [shape = 's32[2]{0}', space=sflag, size = 0x8, scoped, tag = 'scoped memory for tpu_custom_call.1']
    #allocation5 [shape = 'u8[8192]{0}', space=vmem, size = 0x2000, scoped, tag = 'output window, operand 0']
    %17 = vsyncpa [#allocation3], 0
    %s18 = scalar_lea.sflag [#allocation3], 1
    %19 = vsyncpa %s18, 0
    %20 = vsyncpa [#allocation4], 0
    %s21 = scalar_lea.sflag [#allocation4], 1
    %22 = vsyncpa %s21, 0
    loop: start=0, step=1, limit=6
    $region2: #{tpu_custom_call.1} parent=1 // loop_pre_header
      _
    $region3: #{tpu_custom_call.1} parent=1 // loop_header
      %s24 = sphi 0, %s28
      %p25 = scmp.ge.s32.totalorder %s24, 6
      %s31 = sphi 0, %s43
      %s32 = sphi 0, %s39
      %s33 = sphi 0, %s31
      %s34 = sphi 0, %s32
      %s35 = sphi 0, %s33
      %s36 = sphi 0, %s34
      %s46 = sphi 0, %s48
      %s49 = sphi 0, %s46
      %s50 = sphi 0, %s49
      %s66 = sphi 0, %s50
      %s72 = sphi 0, %s74
      %s75 = sphi 0, %s72
      %s76 = sphi 0, %s75
      %s92 = sphi 0, %s76
      %s98 = sphi 0, %s100
      %s101 = sphi 0, %s98
      %s102 = sphi 0, %s101
      %s118 = sphi 0, %s102
      %s124 = sphi 0, %s126
      %s127 = sphi 0, %s124
      %s128 = sphi 0, %s127
      %s144 = sphi 0, %s128
      %s150 = sphi 0, %s152
      %s153 = sphi 0, %s150
      %s154 = sphi 0, %s153
      %s170 = sphi 0, %s154
      %s176 = sphi 0, %s178
      %s179 = sphi 0, %s176
      %s180 = sphi 0, %s179
      %s196 = sphi 0, %s180
      %s202 = sphi 0, %s204
      %s205 = sphi 0, %s202
      %s206 = sphi 0, %s205
      %s222 = sphi 0, %s206
      %s228 = sphi 0, %s230
      %s231 = sphi 0, %s228
      %s232 = sphi 0, %s231
      %s248 = sphi 0, %s232
      %s254 = sphi 0, %s256
      %s257 = sphi 0, %s254
      %s258 = sphi 0, %s257
      %s274 = sphi 0, %s258
      %s280 = sphi 0, %s282
      %s283 = sphi 0, %s280
      %s284 = sphi 0, %s283
      %s300 = sphi 0, %s284
      %s306 = sphi 0, %s308
      %s309 = sphi 0, %s306
      %s310 = sphi 0, %s309
      %s326 = sphi 0, %s310
      %s332 = sphi 0, %s334
      %s335 = sphi 0, %s332
      %s336 = sphi 0, %s335
      %s352 = sphi 0, %s336
      %s358 = sphi 0, %s360
      %s361 = sphi 0, %s358
      %s362 = sphi 0, %s361
      %s378 = sphi 0, %s362
    $region4: #{tpu_custom_call.1} parent=1 // loop_header_branch
      %27 = sbr.rel (%p25) target = $region8
    $region5: #{tpu_custom_call.1} parent=1 // loop_body
      %s29 = ssub.s32 %s24, 1
      %s30 = ssub.s32 %s24, 2
      %s37 = sadd.s32 1, %s32
      %p38 = scmp.ge.s32.totalorder %s37, 2
      %s39 = scalar_select %p38, 0, %s37
      %s40 = sadd.s32 1, %s31
      %s41 = scalar_select %p38, %s40, %s31
      %p42 = scmp.ge.s32.totalorder %s41, 2
      %s43 = scalar_select %p42, 0, %s41
      %s44 = ssub.s32 %s31, %s43
      %p45 = scmp.eq.s32.totalorder %s44, 0
      %s47 = sadd.s32 %s46, 1
      %s48 = scalar_select %p45, %s46, %s47
      %p51 = pneg %p45
      %p52 = scmp.eq.s32.totalorder %s24, 3
      %p53 = por %p51, %p52
      %p54 = scmp.ne.s32.totalorder %s46, %s49
      %p55 = scmp.eq.s32.totalorder %s24, 0
      %p56 = por %p54, %p55
      %p57 = scmp.ne.s32.totalorder %s46, %s49
      %p58 = scmp.eq.s32.totalorder %s29, 3
      %p59 = por %p57, %p58
      %p60 = scmp.ne.s32.totalorder %s49, %s50
      %p61 = scmp.eq.s32.totalorder %s29, 0
      %p62 = por %p60, %p61
      %p63 = scmp.ne.s32.totalorder %s49, %s50
      %p64 = scmp.eq.s32.totalorder %s30, 3
      %p65 = por %p63, %p64
      %p67 = scmp.ne.s32.totalorder %s50, %s66
      %p68 = scmp.eq.s32.totalorder %s30, 0
      %p69 = por %p67, %p68
      %s70 = ssub.s32 %s32, %s39
      %p71 = scmp.eq.s32.totalorder %s70, 0
      %s73 = sadd.s32 %s72, 1
      %s74 = scalar_select %p71, %s72, %s73
      %p77 = pneg %p71
      %p78 = scmp.eq.s32.totalorder %s24, 3
      %p79 = por %p77, %p78
      %p80 = scmp.ne.s32.totalorder %s72, %s75
      %p81 = scmp.eq.s32.totalorder %s24, 0
      %p82 = por %p80, %p81
      %p83 = scmp.ne.s32.totalorder %s72, %s75
      %p84 = scmp.eq.s32.totalorder %s29, 3
      %p85 = por %p83, %p84
      %p86 = scmp.ne.s32.totalorder %s75, %s76
      %p87 = scmp.eq.s32.totalorder %s29, 0
      %p88 = por %p86, %p87
      %p89 = scmp.ne.s32.totalorder %s75, %s76
      %p90 = scmp.eq.s32.totalorder %s30, 3
      %p91 = por %p89, %p90
      %p93 = scmp.ne.s32.totalorder %s76, %s92
      %p94 = scmp.eq.s32.totalorder %s30, 0
      %p95 = por %p93, %p94
      %s96 = ssub.s32 %s32, %s39
      %p97 = scmp.eq.s32.totalorder %s96, 0
      %s99 = sadd.s32 %s98, 1
      %s100 = scalar_select %p97, %s98, %s99
      %p103 = pneg %p97
      %p104 = scmp.eq.s32.totalorder %s24, 3
      %p105 = por %p103, %p104
      %p106 = scmp.ne.s32.totalorder %s98, %s101
      %p107 = scmp.eq.s32.totalorder %s24, 0
      %p108 = por %p106, %p107
      %p109 = scmp.ne.s32.totalorder %s98, %s101
      %p110 = scmp.eq.s32.totalorder %s29, 3
      %p111 = por %p109, %p110
      %p112 = scmp.ne.s32.totalorder %s101, %s102
      %p113 = scmp.eq.s32.totalorder %s29, 0
      %p114 = por %p112, %p113
      %p115 = scmp.ne.s32.totalorder %s101, %s102
      %p116 = scmp.eq.s32.totalorder %s30, 3
      %p117 = por %p115, %p116
      %p119 = scmp.ne.s32.totalorder %s102, %s118
      %p120 = scmp.eq.s32.totalorder %s30, 0
      %p121 = por %p119, %p120
      %s122 = ssub.s32 %s32, %s39
      %p123 = scmp.eq.s32.totalorder %s122, 0
      %s125 = sadd.s32 %s124, 1
      %s126 = scalar_select %p123, %s124, %s125
      %p129 = pneg %p123
      %p130 = scmp.eq.s32.totalorder %s24, 3
      %p131 = por %p129, %p130
      %p132 = scmp.ne.s32.totalorder %s124, %s127
      %p133 = scmp.eq.s32.totalorder %s24, 0
      %p134 = por %p132, %p133
      %p135 = scmp.ne.s32.totalorder %s124, %s127
      %p136 = scmp.eq.s32.totalorder %s29, 3
      %p137 = por %p135, %p136
      %p138 = scmp.ne.s32.totalorder %s127, %s128
      %p139 = scmp.eq.s32.totalorder %s29, 0
      %p140 = por %p138, %p139
      %p141 = scmp.ne.s32.totalorder %s127, %s128
      %p142 = scmp.eq.s32.totalorder %s30, 3
      %p143 = por %p141, %p142
      %p145 = scmp.ne.s32.totalorder %s128, %s144
      %p146 = scmp.eq.s32.totalorder %s30, 0
      %p147 = por %p145, %p146
      %s148 = ssub.s32 %s32, %s39
      %p149 = scmp.eq.s32.totalorder %s148, 0
      %s151 = sadd.s32 %s150, 1
      %s152 = scalar_select %p149, %s150, %s151
      %p155 = pneg %p149
      %p156 = scmp.eq.s32.totalorder %s24, 3
      %p157 = por %p155, %p156
      %p158 = scmp.ne.s32.totalorder %s150, %s153
      %p159 = scmp.eq.s32.totalorder %s24, 0
      %p160 = por %p158, %p159
      %p161 = scmp.ne.s32.totalorder %s150, %s153
      %p162 = scmp.eq.s32.totalorder %s29, 3
      %p163 = por %p161, %p162
      %p164 = scmp.ne.s32.totalorder %s153, %s154
      %p165 = scmp.eq.s32.totalorder %s29, 0
      %p166 = por %p164, %p165
      %p167 = scmp.ne.s32.totalorder %s153, %s154
      %p168 = scmp.eq.s32.totalorder %s30, 3
      %p169 = por %p167, %p168
      %p171 = scmp.ne.s32.totalorder %s154, %s170
      %p172 = scmp.eq.s32.totalorder %s30, 0
      %p173 = por %p171, %p172
      %s174 = ssub.s32 %s32, %s39
      %p175 = scmp.eq.s32.totalorder %s174, 0
      %s177 = sadd.s32 %s176, 1
      %s178 = scalar_select %p175, %s176, %s177
      %p181 = pneg %p175
      %p182 = scmp.eq.s32.totalorder %s24, 3
      %p183 = por %p181, %p182
      %p184 = scmp.ne.s32.totalorder %s176, %s179
      %p185 = scmp.eq.s32.totalorder %s24, 0
      %p186 = por %p184, %p185
      %p187 = scmp.ne.s32.totalorder %s176, %s179
      %p188 = scmp.eq.s32.totalorder %s29, 3
      %p189 = por %p187, %p188
      %p190 = scmp.ne.s32.totalorder %s179, %s180
      %p191 = scmp.eq.s32.totalorder %s29, 0
      %p192 = por %p190, %p191
      %p193 = scmp.ne.s32.totalorder %s179, %s180
      %p194 = scmp.eq.s32.totalorder %s30, 3
      %p195 = por %p193, %p194
      %p197 = scmp.ne.s32.totalorder %s180, %s196
      %p198 = scmp.eq.s32.totalorder %s30, 0
      %p199 = por %p197, %p198
      %s200 = ssub.s32 %s32, %s39
      %p201 = scmp.eq.s32.totalorder %s200, 0
      %s203 = sadd.s32 %s202, 1
      %s204 = scalar_select %p201, %s202, %s203
      %p207 = pneg %p201
      %p208 = scmp.eq.s32.totalorder %s24, 3
      %p209 = por %p207, %p208
      %p210 = scmp.ne.s32.totalorder %s202, %s205
      %p211 = scmp.eq.s32.totalorder %s24, 0
      %p212 = por %p210, %p211
      %p213 = scmp.ne.s32.totalorder %s202, %s205
      %p214 = scmp.eq.s32.totalorder %s29, 3
      %p215 = por %p213, %p214
      %p216 = scmp.ne.s32.totalorder %s205, %s206
      %p217 = scmp.eq.s32.totalorder %s29, 0
      %p218 = por %p216, %p217
      %p219 = scmp.ne.s32.totalorder %s205, %s206
      %p220 = scmp.eq.s32.totalorder %s30, 3
      %p221 = por %p219, %p220
      %p223 = scmp.ne.s32.totalorder %s206, %s222
      %p224 = scmp.eq.s32.totalorder %s30, 0
      %p225 = por %p223, %p224
      %s226 = ssub.s32 %s32, %s39
      %p227 = scmp.eq.s32.totalorder %s226, 0
      %s229 = sadd.s32 %s228, 1
      %s230 = scalar_select %p227, %s228, %s229
      %p233 = pneg %p227
      %p234 = scmp.eq.s32.totalorder %s24, 3
      %p235 = por %p233, %p234
      %p236 = scmp.ne.s32.totalorder %s228, %s231
      %p237 = scmp.eq.s32.totalorder %s24, 0
      %p238 = por %p236, %p237
      %p239 = scmp.ne.s32.totalorder %s228, %s231
      %p240 = scmp.eq.s32.totalorder %s29, 3
      %p241 = por %p239, %p240
      %p242 = scmp.ne.s32.totalorder %s231, %s232
      %p243 = scmp.eq.s32.totalorder %s29, 0
      %p244 = por %p242, %p243
      %p245 = scmp.ne.s32.totalorder %s231, %s232
      %p246 = scmp.eq.s32.totalorder %s30, 3
      %p247 = por %p245, %p246
      %p249 = scmp.ne.s32.totalorder %s232, %s248
      %p250 = scmp.eq.s32.totalorder %s30, 0
      %p251 = por %p249, %p250
      %s252 = ssub.s32 %s32, %s39
      %p253 = scmp.eq.s32.totalorder %s252, 0
      %s255 = sadd.s32 %s254, 1
      %s256 = scalar_select %p253, %s254, %s255
      %p259 = pneg %p253
      %p260 = scmp.eq.s32.totalorder %s24, 3
      %p261 = por %p259, %p260
      %p262 = scmp.ne.s32.totalorder %s254, %s257
      %p263 = scmp.eq.s32.totalorder %s24, 0
      %p264 = por %p262, %p263
      %p265 = scmp.ne.s32.totalorder %s254, %s257
      %p266 = scmp.eq.s32.totalorder %s29, 3
      %p267 = por %p265, %p266
      %p268 = scmp.ne.s32.totalorder %s257, %s258
      %p269 = scmp.eq.s32.totalorder %s29, 0
      %p270 = por %p268, %p269
      %p271 = scmp.ne.s32.totalorder %s257, %s258
      %p272 = scmp.eq.s32.totalorder %s30, 3
      %p273 = por %p271, %p272
      %p275 = scmp.ne.s32.totalorder %s258, %s274
      %p276 = scmp.eq.s32.totalorder %s30, 0
      %p277 = por %p275, %p276
      %s278 = ssub.s32 %s32, %s39
      %p279 = scmp.eq.s32.totalorder %s278, 0
      %s281 = sadd.s32 %s280, 1
      %s282 = scalar_select %p279, %s280, %s281
      %p285 = pneg %p279
      %p286 = scmp.eq.s32.totalorder %s24, 3
      %p287 = por %p285, %p286
      %p288 = scmp.ne.s32.totalorder %s280, %s283
      %p289 = scmp.eq.s32.totalorder %s24, 0
      %p290 = por %p288, %p289
      %p291 = scmp.ne.s32.totalorder %s280, %s283
      %p292 = scmp.eq.s32.totalorder %s29, 3
      %p293 = por %p291, %p292
      %p294 = scmp.ne.s32.totalorder %s283, %s284
      %p295 = scmp.eq.s32.totalorder %s29, 0
      %p296 = por %p294, %p295
      %p297 = scmp.ne.s32.totalorder %s283, %s284
      %p298 = scmp.eq.s32.totalorder %s30, 3
      %p299 = por %p297, %p298
      %p301 = scmp.ne.s32.totalorder %s284, %s300
      %p302 = scmp.eq.s32.totalorder %s30, 0
      %p303 = por %p301, %p302
      %s304 = ssub.s32 %s32, %s39
      %p305 = scmp.eq.s32.totalorder %s304, 0
      %s307 = sadd.s32 %s306, 1
      %s308 = scalar_select %p305, %s306, %s307
      %p311 = pneg %p305
      %p312 = scmp.eq.s32.totalorder %s24, 3
      %p313 = por %p311, %p312
      %p314 = scmp.ne.s32.totalorder %s306, %s309
      %p315 = scmp.eq.s32.totalorder %s24, 0
      %p316 = por %p314, %p315
      %p317 = scmp.ne.s32.totalorder %s306, %s309
      %p318 = scmp.eq.s32.totalorder %s29, 3
      %p319 = por %p317, %p318
      %p320 = scmp.ne.s32.totalorder %s309, %s310
      %p321 = scmp.eq.s32.totalorder %s29, 0
      %p322 = por %p320, %p321
      %p323 = scmp.ne.s32.totalorder %s309, %s310
      %p324 = scmp.eq.s32.totalorder %s30, 3
      %p325 = por %p323, %p324
      %p327 = scmp.ne.s32.totalorder %s310, %s326
      %p328 = scmp.eq.s32.totalorder %s30, 0
      %p329 = por %p327, %p328
      %s330 = ssub.s32 %s32, %s39
      %p331 = scmp.eq.s32.totalorder %s330, 0
      %s333 = sadd.s32 %s332, 1
      %s334 = scalar_select %p331, %s332, %s333
      %p337 = pneg %p331
      %p338 = scmp.eq.s32.totalorder %s24, 3
      %p339 = por %p337, %p338
      %p340 = scmp.ne.s32.totalorder %s332, %s335
      %p341 = scmp.eq.s32.totalorder %s24, 0
      %p342 = por %p340, %p341
      %p343 = scmp.ne.s32.totalorder %s332, %s335
      %p344 = scmp.eq.s32.totalorder %s29, 3
      %p345 = por %p343, %p344
      %p346 = scmp.ne.s32.totalorder %s335, %s336
      %p347 = scmp.eq.s32.totalorder %s29, 0
      %p348 = por %p346, %p347
      %p349 = scmp.ne.s32.totalorder %s335, %s336
      %p350 = scmp.eq.s32.totalorder %s30, 3
      %p351 = por %p349, %p350
      %p353 = scmp.ne.s32.totalorder %s336, %s352
      %p354 = scmp.eq.s32.totalorder %s30, 0
      %p355 = por %p353, %p354
      %s356 = ssub.s32 %s31, %s43
      %p357 = scmp.eq.s32.totalorder %s356, 0
      %s359 = sadd.s32 %s358, 1
      %s360 = scalar_select %p357, %s358, %s359
      %p363 = pneg %p357
      %p364 = scmp.eq.s32.totalorder %s24, 3
      %p365 = por %p363, %p364
      %p366 = scmp.ne.s32.totalorder %s358, %s361
      %p367 = scmp.eq.s32.totalorder %s24, 0
      %p368 = por %p366, %p367
      %p369 = scmp.ne.s32.totalorder %s358, %s361
      %p370 = scmp.eq.s32.totalorder %s29, 3
      %p371 = por %p369, %p370
      %p372 = scmp.ne.s32.totalorder %s361, %s362
      %p373 = scmp.eq.s32.totalorder %s29, 0
      %p374 = por %p372, %p373
      %p375 = scmp.ne.s32.totalorder %s361, %s362
      %p376 = scmp.eq.s32.totalorder %s30, 3
      %p377 = por %p375, %p376
      %p379 = scmp.ne.s32.totalorder %s362, %s378
      %p380 = scmp.eq.s32.totalorder %s30, 0
      %p381 = por %p379, %p380
      %p382 = scmp.le.s32.totalorder 1, %s24
      %p383 = scmp.lt.s32.totalorder %s24, 5
      %p384 = pnand %p382, %p383
      %p385 = pneg %p384
      // Predicated region
      $region9: #{tpu_custom_call.1} parent=5 // pred_check
        _
      $region10: #{tpu_custom_call.1} parent=5 // pred_check_branch
        %387 = sbr.rel (%p384) target = $region12
      $region11: #{tpu_custom_call.1} parent=5 // pred_region
        %s388 = ssub.s32 %s24, 1
      $region12: #{tpu_custom_call.1} parent=5 // pred_fallthru
        _
      %p389 = scmp.lt.s32.totalorder %s24, 4
      // Predicated region
      $region13: #{tpu_custom_call.1} parent=5 // pred_check
        %p390 = pneg %p389
      $region14: #{tpu_custom_call.1} parent=5 // pred_check_branch
        %392 = sbr.rel (%p390) target = $region16
      $region15: #{tpu_custom_call.1} parent=5 // pred_region
        // Predicated region
        $region17: #{tpu_custom_call.1} parent=15 // pred_check
          %p393 = pneg %p56
        $region18: #{tpu_custom_call.1} parent=15 // pred_check_branch
          %395 = sbr.rel (%p393) target = $region20
        $region19: #{tpu_custom_call.1} parent=15 // pred_region
          %s396 = sand.u32 %s46, 1
          %s397 = scalar_lea.sflag [#allocation3], %s396
          %s398 = sand.u32 %s46, 1
          %s399 = smul.addr %s398, 8
          %s400 = scalar_lea.vmem [#allocation2], %s399
          %402 = vsyncadd %s397, 0
          %s403 = smul.addr %s31, 8
          %s404 = scalar_lea.hbm %s0, %s403
          %s406 = sshll.u32 %s404, 4
          %s407 = int_to_ptr.hbm [resolvable:$true] %s406
          %s408 = sshll.u32 %s400, 4
          %s409 = int_to_ptr.vmem [resolvable:$true] %s408
          %411 = dma.hbm_to_vmem [thread:$0]  %s407, 128, %s409, %s397
        $region20: #{tpu_custom_call.1} parent=15 // pred_fallthru
          _
        // Predicated region
        $region21: #{tpu_custom_call.1} parent=15 // pred_check
          %p412 = pneg %p82
        $region22: #{tpu_custom_call.1} parent=15 // pred_check_branch
          %414 = sbr.rel (%p412) target = $region24
        $region23: #{tpu_custom_call.1} parent=15 // pred_region
          %p415 = scmp.lt.s32.totalorder %s32, 1
          %s416 = scalar_select %p415, %s32, 1
          %s417 = scalar_lea.vmem %s1, %s416
        $region24: #{tpu_custom_call.1} parent=15 // pred_fallthru
          _
        // Predicated region
        $region25: #{tpu_custom_call.1} parent=15 // pred_check
          %p418 = pneg %p108
        $region26: #{tpu_custom_call.1} parent=15 // pred_check_branch
          %420 = sbr.rel (%p418) target = $region28
        $region27: #{tpu_custom_call.1} parent=15 // pred_region
          %p421 = scmp.lt.s32.totalorder %s32, 1
          %s422 = scalar_select %p421, %s32, 1
          %s423 = scalar_lea.vmem %s2, %s422
        $region28: #{tpu_custom_call.1} parent=15 // pred_fallthru
          _
        // Predicated region
        $region29: #{tpu_custom_call.1} parent=15 // pred_check
          %p424 = pneg %p134
        $region30: #{tpu_custom_call.1} parent=15 // pred_check_branch
          %426 = sbr.rel (%p424) target = $region32
        $region31: #{tpu_custom_call.1} parent=15 // pred_region
          %p427 = scmp.lt.s32.totalorder %s32, 1
          %s428 = scalar_select %p427, %s32, 1
          %s429 = smul.addr %s428, 4
          %s430 = smul.addr %s429, 8
          %s431 = scalar_lea.vmem %s3, %s430
        $region32: #{tpu_custom_call.1} parent=15 // pred_fallthru
          _
        // Predicated region
        $region33: #{tpu_custom_call.1} parent=15 // pred_check
          %p432 = pneg %p160
        $region34: #{tpu_custom_call.1} parent=15 // pred_check_branch
          %434 = sbr.rel (%p432) target = $region36
        $region35: #{tpu_custom_call.1} parent=15 // pred_region
          %p435 = scmp.lt.s32.totalorder %s32, 1
          %s436 = scalar_select %p435, %s32, 1
          %s437 = smul.addr %s436, 4
          %s438 = smul.addr %s437, 8
          %s439 = scalar_lea.vmem %s4, %s438
        $region36: #{tpu_custom_call.1} parent=15 // pred_fallthru
          _
        // Predicated region
        $region37: #{tpu_custom_call.1} parent=15 // pred_check
          %p440 = pneg %p186
        $region38: #{tpu_custom_call.1} parent=15 // pred_check_branch
          %442 = sbr.rel (%p440) target = $region40
        $region39: #{tpu_custom_call.1} parent=15 // pred_region
          %p443 = scmp.lt.s32.totalorder %s32, 1
          %s444 = scalar_select %p443, %s32, 1
          %s445 = scalar_lea.vmem %s5, %s444
        $region40: #{tpu_custom_call.1} parent=15 // pred_fallthru
          _
        // Predicated region
        $region41: #{tpu_custom_call.1} parent=15 // pred_check
          %p446 = pneg %p212
        $region42: #{tpu_custom_call.1} parent=15 // pred_check_branch
          %448 = sbr.rel (%p446) target = $region44
        $region43: #{tpu_custom_call.1} parent=15 // pred_region
          %p449 = scmp.lt.s32.totalorder %s32, 1
          %s450 = scalar_select %p449, %s32, 1
          %s451 = scalar_lea.vmem %s6, %s450
        $region44: #{tpu_custom_call.1} parent=15 // pred_fallthru
          _
        // Predicated region
        $region45: #{tpu_custom_call.1} parent=15 // pred_check
          %p452 = pneg %p238
        $region46: #{tpu_custom_call.1} parent=15 // pred_check_branch
          %454 = sbr.rel (%p452) target = $region48
        $region47: #{tpu_custom_call.1} parent=15 // pred_region
          %p455 = scmp.lt.s32.totalorder %s32, 1
          %s456 = scalar_select %p455, %s32, 1
          %s457 = scalar_lea.vmem %s7, %s456
        $region48: #{tpu_custom_call.1} parent=15 // pred_fallthru
          _
        // Predicated region
        $region49: #{tpu_custom_call.1} parent=15 // pred_check
          %p458 = pneg %p264
        $region50: #{tpu_custom_call.1} parent=15 // pred_check_branch
          %460 = sbr.rel (%p458) target = $region52
        $region51: #{tpu_custom_call.1} parent=15 // pred_region
          %p461 = scmp.lt.s32.totalorder %s32, 1
          %s462 = scalar_select %p461, %s32, 1
          %s463 = smul.addr %s462, 4
          %s464 = smul.addr %s463, 8
          %s465 = scalar_lea.vmem %s8, %s464
        $region52: #{tpu_custom_call.1} parent=15 // pred_fallthru
          _
        // Predicated region
        $region53: #{tpu_custom_call.1} parent=15 // pred_check
          %p466 = pneg %p290
        $region54: #{tpu_custom_call.1} parent=15 // pred_check_branch
          %468 = sbr.rel (%p466) target = $region56
        $region55: #{tpu_custom_call.1} parent=15 // pred_region
          %p469 = scmp.lt.s32.totalorder %s32, 1
          %s470 = scalar_select %p469, %s32, 1
          %s471 = scalar_lea.vmem %s9, %s470
        $region56: #{tpu_custom_call.1} parent=15 // pred_fallthru
          _
        // Predicated region
        $region57: #{tpu_custom_call.1} parent=15 // pred_check
          %p472 = pneg %p316
        $region58: #{tpu_custom_call.1} parent=15 // pred_check_branch
          %474 = sbr.rel (%p472) target = $region60
        $region59: #{tpu_custom_call.1} parent=15 // pred_region
          %p475 = scmp.lt.s32.totalorder %s32, 1
          %s476 = scalar_select %p475, %s32, 1
          %s477 = smul.addr %s476, 8
          %s478 = smul.addr %s477, 8
          %s479 = scalar_lea.vmem %s10, %s478
        $region60: #{tpu_custom_call.1} parent=15 // pred_fallthru
          _
        // Predicated region
        $region61: #{tpu_custom_call.1} parent=15 // pred_check
          %p480 = pneg %p342
        $region62: #{tpu_custom_call.1} parent=15 // pred_check_branch
          %482 = sbr.rel (%p480) target = $region64
        $region63: #{tpu_custom_call.1} parent=15 // pred_region
          %p483 = scmp.lt.s32.totalorder %s32, 1
          %s484 = scalar_select %p483, %s32, 1
          %s485 = scalar_lea.vmem %s11, %s484
        $region64: #{tpu_custom_call.1} parent=15 // pred_fallthru
          _
      $region16: #{tpu_custom_call.1} parent=5 // pred_fallthru
        _
      %p486 = scmp.le.s32.totalorder 1, %s24
      %p487 = scmp.lt.s32.totalorder %s24, 5
      %p488 = pnand %p486, %p487
      %p489 = pneg %p488
      // Predicated region
      $region65: #{tpu_custom_call.1} parent=5 // pred_check
        _
      $region66: #{tpu_custom_call.1} parent=5 // pred_check_branch
        %491 = sbr.rel (%p488) target = $region68
      $region67: #{tpu_custom_call.1} parent=5 // pred_region
        %s492 = ssub.s32 %s24, 1
        %s493 = sand.u32 %s49, 1
        %s494 = scalar_lea.sflag [#allocation3], %s493
        %s495 = sand.u32 %s49, 1
        %s496 = smul.addr %s495, 8
        %s497 = scalar_lea.vmem [#allocation2], %s496
        // Predicated region
        $region69: #{tpu_custom_call.1} parent=67 // pred_check
          %p498 = pneg %p62
        $region70: #{tpu_custom_call.1} parent=67 // pred_check_branch
          %500 = sbr.rel (%p498) target = $region72
        $region71: #{tpu_custom_call.1} parent=67 // pred_region
          %502 = dma.done %s494, 128
        $region72: #{tpu_custom_call.1} parent=67 // pred_fallthru
          _
        %s503 = sand.u32 %s49, 1
        %s504 = scalar_lea.sflag [#allocation3], %s503
        %s505 = sand.u32 %s49, 1
        %s506 = smul.addr %s505, 8
        %s507 = scalar_lea.vmem [#allocation2], %s506
        %p508 = pneg %p62
        %p509 = pneg %p59
        %p510 = scmp.lt.s32.totalorder %s34, 1
        %s511 = scalar_select %p510, %s34, 1
        %s512 = scalar_lea.vmem %s1, %s511
        %p513 = pneg %p88
        %p514 = pneg %p85
        %p515 = scmp.lt.s32.totalorder %s34, 1
        %s516 = scalar_select %p515, %s34, 1
        %s517 = scalar_lea.vmem %s2, %s516
        %p518 = pneg %p114
        %p519 = pneg %p111
        %p520 = scmp.lt.s32.totalorder %s34, 1
        %s521 = scalar_select %p520, %s34, 1
        %s522 = smul.addr %s521, 4
        %s523 = smul.addr %s522, 8
        %s524 = scalar_lea.vmem %s3, %s523
        %p525 = pneg %p140
        %p526 = pneg %p137
        %p527 = scmp.lt.s32.totalorder %s34, 1
        %s528 = scalar_select %p527, %s34, 1
        %s529 = smul.addr %s528, 4
        %s530 = smul.addr %s529, 8
        %s531 = scalar_lea.vmem %s4, %s530
        %p532 = pneg %p166
        %p533 = pneg %p163
        %p534 = scmp.lt.s32.totalorder %s34, 1
        %s535 = scalar_select %p534, %s34, 1
        %s536 = scalar_lea.vmem %s5, %s535
        %p537 = pneg %p192
        %p538 = pneg %p189
        %p539 = scmp.lt.s32.totalorder %s34, 1
        %s540 = scalar_select %p539, %s34, 1
        %s541 = scalar_lea.vmem %s6, %s540
        %p542 = pneg %p218
        %p543 = pneg %p215
        %p544 = scmp.lt.s32.totalorder %s34, 1
        %s545 = scalar_select %p544, %s34, 1
        %s546 = scalar_lea.vmem %s7, %s545
        %p547 = pneg %p244
        %p548 = pneg %p241
        %p549 = scmp.lt.s32.totalorder %s34, 1
        %s550 = scalar_select %p549, %s34, 1
        %s551 = smul.addr %s550, 4
        %s552 = smul.addr %s551, 8
        %s553 = scalar_lea.vmem %s8, %s552
        %p554 = pneg %p270
        %p555 = pneg %p267
        %p556 = scmp.lt.s32.totalorder %s34, 1
        %s557 = scalar_select %p556, %s34, 1
        %s558 = scalar_lea.vmem %s9, %s557
        %p559 = pneg %p296
        %p560 = pneg %p293
        %p561 = scmp.lt.s32.totalorder %s34, 1
        %s562 = scalar_select %p561, %s34, 1
        %s563 = smul.addr %s562, 8
        %s564 = smul.addr %s563, 8
        %s565 = scalar_lea.vmem %s10, %s564
        %p566 = pneg %p322
        %p567 = pneg %p319
        %p568 = scmp.lt.s32.totalorder %s34, 1
        %s569 = scalar_select %p568, %s34, 1
        %s570 = scalar_lea.vmem %s11, %s569
        %p571 = pneg %p348
        %p572 = pneg %p345
        %p573 = pneg %p374
        %p574 = pneg %p371
        %s575 = sand.u32 %s361, 1
        %s576 = scalar_lea.sflag [#allocation4], %s575
        %s577 = sand.u32 %s361, 1
        %s578 = smul.addr %s577, 8
        %s579 = scalar_lea.vmem [#allocation5], %s578
        %p580 = scmp.lt.s32.totalorder %s34, 1
        %s581 = scalar_select %p580, %s34, 1
        %s582 = scalar_lea.vmem %s1, %s581
        %p583 = scmp.lt.s32.totalorder %s34, 1
        %s584 = scalar_select %p583, %s34, 1
        %s585 = scalar_lea.vmem %s2, %s584
        %p586 = scmp.lt.s32.totalorder %s34, 1
        %s587 = scalar_select %p586, %s34, 1
        %s588 = smul.addr %s587, 4
        %s589 = smul.addr %s588, 8
        %s590 = scalar_lea.vmem %s3, %s589
        %p591 = scmp.lt.s32.totalorder %s34, 1
        %s592 = scalar_select %p591, %s34, 1
        %s593 = smul.addr %s592, 4
        %s594 = smul.addr %s593, 8
        %s595 = scalar_lea.vmem %s4, %s594
        %p596 = scmp.lt.s32.totalorder %s34, 1
        %s597 = scalar_select %p596, %s34, 1
        %s598 = scalar_lea.vmem %s5, %s597
        %p599 = scmp.lt.s32.totalorder %s34, 1
        %s600 = scalar_select %p599, %s34, 1
        %s601 = scalar_lea.vmem %s6, %s600
        %p602 = scmp.lt.s32.totalorder %s34, 1
        %s603 = scalar_select %p602, %s34, 1
        %s604 = scalar_lea.vmem %s7, %s603
        %p605 = scmp.lt.s32.totalorder %s34, 1
        %s606 = scalar_select %p605, %s34, 1
        %s607 = smul.addr %s606, 4
        %s608 = smul.addr %s607, 8
        %s609 = scalar_lea.vmem %s8, %s608
        %p610 = scmp.lt.s32.totalorder %s34, 1
        %s611 = scalar_select %p610, %s34, 1
        %s612 = scalar_lea.vmem %s9, %s611
        %p613 = scmp.lt.s32.totalorder %s34, 1
        %s614 = scalar_select %p613, %s34, 1
        %s615 = smul.addr %s614, 8
        %s616 = smul.addr %s615, 8
        %s617 = scalar_lea.vmem %s10, %s616
        %p618 = scmp.lt.s32.totalorder %s34, 1
        %s619 = scalar_select %p618, %s34, 1
        %s620 = scalar_lea.vmem %s11, %s619
        %p621 = scmp.eq.s32.totalorder %s34, 0
        // Predicated region
        $region73: #{tpu_custom_call.1} parent=67 // pred_check
          %p622 = pneg %p621
        $region74: #{tpu_custom_call.1} parent=67 // pred_check_branch
          %624 = sbr.rel (%p622) target = $region76
        $region75: #{tpu_custom_call.1} parent=67 // pred_region
          %v625 = vld [vmem:[%s497] sm:$0xff]
          %vm626 = vcmask 261120
          %627 = vst.msk [vmem:[%s579] sm:$0xff] %vm626, %v625
        $region76: #{tpu_custom_call.1} parent=67 // pred_fallthru
          _
        %v628 = vld [vmem:[%s579] sm:$0xff]
        %v629 = vld [vmem:[%s582] sm:$0x1]
        %v630 = vld [vmem:[%s585] sm:$0x1]
        %vm631 = vcmask 261120
        %v632 = vsel %vm631, %v628, 0.0
        %633 = vadd.xlane.f32.xlu0 %v632
        %v634 = vpop.xlane.xlu0 %633
        %v635 = vrcp.pop 32.0
        %v636 = vmul.f32 32.0, %v635
        %v637 = vsub.f32 1.0, %v636
        %v638 = vmul.f32 %v635, %v637
        %v639 = vadd.f32 %v635, %v638
        %vm640 = vweird.f32 %v635
        %v641 = vsel %vm640, %v635, %v639
        %v642 = vmul.f32 %v634, %v641
        %v643 = vsub.f32 %v628, %v642
        %v644 = vmul.f32 %v643, %v643
        %v645 = vsel %vm631, %v644, 0.0
        %646 = vadd.xlane.f32.xlu0 %v645
        %v647 = vpop.xlane.xlu0 %646
        %v648 = vmul.f32 %v647, %v641
        %v649 = vadd.f32 %v648, 1e-05
        %v650 = vrsqrt.pop %v649
        %v651 = vmul.f32 %v650, %v649
        %v652 = vmul.f32 %v651, %v650
        %v653 = vmul.f32 0.5, %v652
        %v654 = vsub.f32 1.5, %v653
        %v655 = vmul.f32 %v650, %v654
        %vm656 = vweird.f32 %v649
        %vm657 = vweird.f32 %v650
        %vm658 = vmor %vm656, %vm657
        %v659 = vsel %vm658, %v650, %v655
        %v660 = vmul.f32 %v643, %v659
        %v662 = vperm.slane %v629, 0
        %v664 = vmul.f32 %v660, %v662
        %v666 = vperm.slane %v630, 0
        %v668 = vadd.f32 %v664, %v666
        %v669 = vld [vmem:[%s590] sm:$0xff]
        %v670 = vld [vmem:[%s590 + $0x8] sm:$0xff]
        %v671 = vld [vmem:[%s590 + $0x10] sm:$0xff]
        %v672 = vld [vmem:[%s590 + $0x18] sm:$0xff]
        %v674 = vsel %vm631, %v668, 0
        %676 = vmatpush.msra.mxu0 0.0
        %677 = vmatpush.msra.mxu0 0.0
        %678 = vmatpush.msra.mxu0 0.0
        %679 = vmatpush.msra.mxu0 0.0
        %680 = vmatpush.msra.mxu0 0.0
        %681 = vmatpush.msra.mxu0 0.0
        %682 = vmatpush.msra.mxu0 0.0
        %683 = vmatpush.msra.mxu0 0.0
        %684 = vmatpush.msra.mxu0 0.0
        %685 = vmatpush.msra.mxu0 0.0
        %686 = vmatpush.msra.mxu0 0.0
        %687 = vmatpush.msra.mxu0 0.0
        %688 = vmatpush.msra.mxu0 %v672
        %689 = vmatpush.msra.mxu0 %v671
        %690 = vmatpush.msra.mxu0 %v670
        %691 = vmatpush.msra.mxu0 %v669
        %692 = vmatmul.f32.gmra.mxu0 %v674
        %v693 = vpop.f32.mrf.mxu0
        %v694 = vadd.f32 0.0, %v693
        %695 = vdwg.mxu0
        %697 = vrot.lane.b32.xlu0 %v694, 96
        %v698 = vpop.permute.xlu0 %697
        %vm699 = vcmask 64512
        %v700 = vsel %vm699, %v694, 0
        %v702 = vsel %vm699, %v698, 0
        %704 = vmatpush.xpose.msra.mxu0 0.0
        %705 = vmatpush.xpose.msra.mxu0 0.0
        %706 = vmatpush.xpose.msra.mxu0 0.0
        %707 = vmatpush.xpose.msra.mxu0 0.0
        %708 = vmatpush.xpose.msra.mxu0 0.0
        %709 = vmatpush.xpose.msra.mxu0 0.0
        %710 = vmatpush.xpose.msra.mxu0 0.0
        %711 = vmatpush.xpose.msra.mxu0 0.0
        %712 = vmatpush.xpose.msra.mxu0 0.0
        %713 = vmatpush.xpose.msra.mxu0 0.0
        %714 = vmatpush.xpose.msra.mxu0 0.0
        %715 = vmatpush.xpose.msra.mxu0 0.0
        %716 = vmatpush.xpose.msra.mxu0 0.0
        %717 = vmatpush.xpose.msra.mxu0 0.0
        %718 = vmatpush.xpose.msra.mxu0 0.0
        %719 = vmatpush.xpose.msra.mxu0 %v702
        %720 = vmatmul.f32.gmra.mxu0 %v700
        %v721 = vpop.f32.mrf.mxu0
        %v722 = vadd.f32 0.0, %v721
        %723 = vdwg.mxu0
        %v724 = vmul.f32 %v722, 0.35355338
        %v725 = vsel %vm699, %v724, -inf
        %726 = vmax.xlane.f32.xlu0 %v725
        %v727 = vpop.xlane.xlu0 %726
        %v728 = vsub.f32 %v724, %v727
        %v729 = vmul.f32 %v728, 1.442695
        %v730 = vpow.pop %v729
        %v731 = vsel %vm699, %v730, 0.0
        %732 = vadd.xlane.f32.xlu0 %v731
        %v733 = vpop.xlane.xlu0 %732
        %v734 = vrcp.pop %v733
        %v735 = vmul.f32 %v730, %v734
        %736 = vrot.lane.b32.xlu0 %v694, 64
        %v737 = vpop.permute.xlu0 %736
        %v740 = vsel %vm699, %v735, 0
        %742 = vmatpush.msra.mxu0 0.0
        %743 = vmatpush.msra.mxu0 0.0
        %744 = vmatpush.msra.mxu0 0.0
        %745 = vmatpush.msra.mxu0 0.0
        %746 = vmatpush.msra.mxu0 0.0
        %747 = vmatpush.msra.mxu0 0.0
        %748 = vmatpush.msra.mxu0 0.0
        %749 = vmatpush.msra.mxu0 0.0
        %750 = vmatpush.msra.mxu0 0.0
        %751 = vmatpush.msra.mxu0 0.0
        %752 = vmatpush.msra.mxu0 0.0
        %753 = vmatpush.msra.mxu0 0.0
        %754 = vmatpush.msra.mxu0 0.0
        %755 = vmatpush.msra.mxu0 0.0
        %756 = vmatpush.msra.mxu0 0.0
        %757 = vmatpush.msra.mxu0 %v737
        %758 = vmatmul.f32.gmra.mxu0 %v740
        %v759 = vpop.f32.mrf.mxu0
        %v760 = vadd.f32 0.0, %v759
        %761 = vdwg.mxu0
        %762 = vrot.lane.b32.xlu0 %v694, 120
        %v763 = vpop.permute.xlu0 %762
        %764 = vrot.lane.b32.xlu0 %v694, 88
        %v765 = vpop.permute.xlu0 %764
        %v766 = vsel %vm699, %v763, 0
        %v768 = vsel %vm699, %v765, 0
        %770 = vmatpush.xpose.msra.mxu0 0.0
        %771 = vmatpush.xpose.msra.mxu0 0.0
        %772 = vmatpush.xpose.msra.mxu0 0.0
        %773 = vmatpush.xpose.msra.mxu0 0.0
        %774 = vmatpush.xpose.msra.mxu0 0.0
        %775 = vmatpush.xpose.msra.mxu0 0.0
        %776 = vmatpush.xpose.msra.mxu0 0.0
        %777 = vmatpush.xpose.msra.mxu0 0.0
        %778 = vmatpush.xpose.msra.mxu0 0.0
        %779 = vmatpush.xpose.msra.mxu0 0.0
        %780 = vmatpush.xpose.msra.mxu0 0.0
        %781 = vmatpush.xpose.msra.mxu0 0.0
        %782 = vmatpush.xpose.msra.mxu0 0.0
        %783 = vmatpush.xpose.msra.mxu0 0.0
        %784 = vmatpush.xpose.msra.mxu0 0.0
        %785 = vmatpush.xpose.msra.mxu0 %v768
        %786 = vmatmul.f32.gmra.mxu0 %v766
        %v787 = vpop.f32.mrf.mxu0
        %v788 = vadd.f32 0.0, %v787
        %789 = vdwg.mxu0
        %v790 = vmul.f32 %v788, 0.35355338
        %v791 = vsel %vm699, %v790, -inf
        %792 = vmax.xlane.f32.xlu0 %v791
        %v793 = vpop.xlane.xlu0 %792
        %v794 = vsub.f32 %v790, %v793
        %v795 = vmul.f32 %v794, 1.442695
        %v796 = vpow.pop %v795
        %v797 = vsel %vm699, %v796, 0.0
        %798 = vadd.xlane.f32.xlu0 %v797
        %v799 = vpop.xlane.xlu0 %798
        %v800 = vrcp.pop %v799
        %v801 = vmul.f32 %v796, %v800
        %802 = vrot.lane.b32.xlu0 %v694, 56
        %v803 = vpop.permute.xlu0 %802
        %v806 = vsel %vm699, %v801, 0
        %808 = vmatpush.msra.mxu0 0.0
        %809 = vmatpush.msra.mxu0 0.0
        %810 = vmatpush.msra.mxu0 0.0
        %811 = vmatpush.msra.mxu0 0.0
        %812 = vmatpush.msra.mxu0 0.0
        %813 = vmatpush.msra.mxu0 0.0
        %814 = vmatpush.msra.mxu0 0.0
        %815 = vmatpush.msra.mxu0 0.0
        %816 = vmatpush.msra.mxu0 0.0
        %817 = vmatpush.msra.mxu0 0.0
        %818 = vmatpush.msra.mxu0 0.0
        %819 = vmatpush.msra.mxu0 0.0
        %820 = vmatpush.msra.mxu0 0.0
        %821 = vmatpush.msra.mxu0 0.0
        %822 = vmatpush.msra.mxu0 0.0
        %823 = vmatpush.msra.mxu0 %v803
        %824 = vmatmul.f32.gmra.mxu0 %v806
        %v825 = vpop.f32.mrf.mxu0
        %v826 = vadd.f32 0.0, %v825
        %827 = vdwg.mxu0
        %828 = vrot.lane.b32.xlu0 %v694, 112
        %v829 = vpop.permute.xlu0 %828
        %830 = vrot.lane.b32.xlu0 %v694, 80
        %v831 = vpop.permute.xlu0 %830
        %v832 = vsel %vm699, %v829, 0
        %v834 = vsel %vm699, %v831, 0
        %836 = vmatpush.xpose.msra.mxu0 0.0
        %837 = vmatpush.xpose.msra.mxu0 0.0
        %838 = vmatpush.xpose.msra.mxu0 0.0
        %839 = vmatpush.xpose.msra.mxu0 0.0
        %840 = vmatpush.xpose.msra.mxu0 0.0
        %841 = vmatpush.xpose.msra.mxu0 0.0
        %842 = vmatpush.xpose.msra.mxu0 0.0
        %843 = vmatpush.xpose.msra.mxu0 0.0
        %844 = vmatpush.xpose.msra.mxu0 0.0
        %845 = vmatpush.xpose.msra.mxu0 0.0
        %846 = vmatpush.xpose.msra.mxu0 0.0
        %847 = vmatpush.xpose.msra.mxu0 0.0
        %848 = vmatpush.xpose.msra.mxu0 0.0
        %849 = vmatpush.xpose.msra.mxu0 0.0
        %850 = vmatpush.xpose.msra.mxu0 0.0
        %851 = vmatpush.xpose.msra.mxu0 %v834
        %852 = vmatmul.f32.gmra.mxu0 %v832
        %v853 = vpop.f32.mrf.mxu0
        %v854 = vadd.f32 0.0, %v853
        %855 = vdwg.mxu0
        %v856 = vmul.f32 %v854, 0.35355338
        %v857 = vsel %vm699, %v856, -inf
        %858 = vmax.xlane.f32.xlu0 %v857
        %v859 = vpop.xlane.xlu0 %858
        %v860 = vsub.f32 %v856, %v859
        %v861 = vmul.f32 %v860, 1.442695
        %v862 = vpow.pop %v861
        %v863 = vsel %vm699, %v862, 0.0
        %864 = vadd.xlane.f32.xlu0 %v863
        %v865 = vpop.xlane.xlu0 %864
        %v866 = vrcp.pop %v865
        %v867 = vmul.f32 %v862, %v866
        %868 = vrot.lane.b32.xlu0 %v694, 48
        %v869 = vpop.permute.xlu0 %868
        %v872 = vsel %vm699, %v867, 0
        %874 = vmatpush.msra.mxu0 0.0
        %875 = vmatpush.msra.mxu0 0.0
        %876 = vmatpush.msra.mxu0 0.0
        %877 = vmatpush.msra.mxu0 0.0
        %878 = vmatpush.msra.mxu0 0.0
        %879 = vmatpush.msra.mxu0 0.0
        %880 = vmatpush.msra.mxu0 0.0
        %881 = vmatpush.msra.mxu0 0.0
        %882 = vmatpush.msra.mxu0 0.0
        %883 = vmatpush.msra.mxu0 0.0
        %884 = vmatpush.msra.mxu0 0.0
        %885 = vmatpush.msra.mxu0 0.0
        %886 = vmatpush.msra.mxu0 0.0
        %887 = vmatpush.msra.mxu0 0.0
        %888 = vmatpush.msra.mxu0 0.0
        %889 = vmatpush.msra.mxu0 %v869
        %890 = vmatmul.f32.gmra.mxu0 %v872
        %v891 = vpop.f32.mrf.mxu0
        %v892 = vadd.f32 0.0, %v891
        %893 = vdwg.mxu0
        %894 = vrot.lane.b32.xlu0 %v694, 104
        %v895 = vpop.permute.xlu0 %894
        %896 = vrot.lane.b32.xlu0 %v694, 72
        %v897 = vpop.permute.xlu0 %896
        %v898 = vsel %vm699, %v895, 0
        %v900 = vsel %vm699, %v897, 0
        %902 = vmatpush.xpose.msra.mxu0 0.0
        %903 = vmatpush.xpose.msra.mxu0 0.0
        %904 = vmatpush.xpose.msra.mxu0 0.0
        %905 = vmatpush.xpose.msra.mxu0 0.0
        %906 = vmatpush.xpose.msra.mxu0 0.0
        %907 = vmatpush.xpose.msra.mxu0 0.0
        %908 = vmatpush.xpose.msra.mxu0 0.0
        %909 = vmatpush.xpose.msra.mxu0 0.0
        %910 = vmatpush.xpose.msra.mxu0 0.0
        %911 = vmatpush.xpose.msra.mxu0 0.0
        %912 = vmatpush.xpose.msra.mxu0 0.0
        %913 = vmatpush.xpose.msra.mxu0 0.0
        %914 = vmatpush.xpose.msra.mxu0 0.0
        %915 = vmatpush.xpose.msra.mxu0 0.0
        %916 = vmatpush.xpose.msra.mxu0 0.0
        %917 = vmatpush.xpose.msra.mxu0 %v900
        %918 = vmatmul.f32.gmra.mxu0 %v898
        %v919 = vpop.f32.mrf.mxu0
        %v920 = vadd.f32 0.0, %v919
        %921 = vdwg.mxu0
        %v922 = vmul.f32 %v920, 0.35355338
        %v923 = vsel %vm699, %v922, -inf
        %924 = vmax.xlane.f32.xlu0 %v923
        %v925 = vpop.xlane.xlu0 %924
        %v926 = vsub.f32 %v922, %v925
        %v927 = vmul.f32 %v926, 1.442695
        %v928 = vpow.pop %v927
        %v929 = vsel %vm699, %v928, 0.0
        %930 = vadd.xlane.f32.xlu0 %v929
        %v931 = vpop.xlane.xlu0 %930
        %v932 = vrcp.pop %v931
        %v933 = vmul.f32 %v928, %v932
        %934 = vrot.lane.b32.xlu0 %v694, 40
        %v935 = vpop.permute.xlu0 %934
        %v938 = vsel %vm699, %v933, 0
        %940 = vmatpush.msra.mxu0 0.0
        %941 = vmatpush.msra.mxu0 0.0
        %942 = vmatpush.msra.mxu0 0.0
        %943 = vmatpush.msra.mxu0 0.0
        %944 = vmatpush.msra.mxu0 0.0
        %945 = vmatpush.msra.mxu0 0.0
        %946 = vmatpush.msra.mxu0 0.0
        %947 = vmatpush.msra.mxu0 0.0
        %948 = vmatpush.msra.mxu0 0.0
        %949 = vmatpush.msra.mxu0 0.0
        %950 = vmatpush.msra.mxu0 0.0
        %951 = vmatpush.msra.mxu0 0.0
        %952 = vmatpush.msra.mxu0 0.0
        %953 = vmatpush.msra.mxu0 0.0
        %954 = vmatpush.msra.mxu0 0.0
        %955 = vmatpush.msra.mxu0 %v935
        %956 = vmatmul.f32.gmra.mxu0 %v938
        %v957 = vpop.f32.mrf.mxu0
        %v958 = vadd.f32 0.0, %v957
        %959 = vdwg.mxu0
        %961 = vrot.lane.b32.xlu0 %v826, 8
        %v962 = vpop.permute.xlu0 %961
        %965 = vrot.lane.b32.xlu0 %v892, 16
        %v966 = vpop.permute.xlu0 %965
        %969 = vrot.lane.b32.xlu0 %v958, 24
        %v970 = vpop.permute.xlu0 %969
        %v972 = vsel %vm699, %v760, %v962
        %vm973 = vcmask 130048
        %v974 = vsel %vm973, %v972, %v966
        %vm975 = vcmask 195584
        %v976 = vsel %vm975, %v974, %v970
        %v977 = vld [vmem:[%s595] sm:$0xff]
        %v978 = vld [vmem:[%s595 + $0x8] sm:$0xff]
        %v979 = vld [vmem:[%s595 + $0x10] sm:$0xff]
        %v980 = vld [vmem:[%s595 + $0x18] sm:$0xff]
        %v982 = vsel %vm631, %v976, 0
        %984 = vmatpush.msra.mxu0 0.0
        %985 = vmatpush.msra.mxu0 0.0
        %986 = vmatpush.msra.mxu0 0.0
        %987 = vmatpush.msra.mxu0 0.0
        %988 = vmatpush.msra.mxu0 0.0
        %989 = vmatpush.msra.mxu0 0.0
        %990 = vmatpush.msra.mxu0 0.0
        %991 = vmatpush.msra.mxu0 0.0
        %992 = vmatpush.msra.mxu0 0.0
        %993 = vmatpush.msra.mxu0 0.0
        %994 = vmatpush.msra.mxu0 0.0
        %995 = vmatpush.msra.mxu0 0.0
        %996 = vmatpush.msra.mxu0 %v980
        %997 = vmatpush.msra.mxu0 %v979
        %998 = vmatpush.msra.mxu0 %v978
        %999 = vmatpush.msra.mxu0 %v977
        %1000 = vmatmul.f32.gmra.mxu0 %v982
        %v1001 = vpop.f32.mrf.mxu0
        %v1002 = vadd.f32 0.0, %v1001
        %1003 = vdwg.mxu0
        %v1004 = vadd.f32 %v628, %v1002
        %v1005 = vld [vmem:[%s598] sm:$0x1]
        %v1007 = vperm.slane %v1005, 0
        %v1009 = vadd.f32 %v1004, %v1007
        %v1010 = vld [vmem:[%s601] sm:$0x1]
        %v1011 = vld [vmem:[%s604] sm:$0x1]
        %v1012 = vsel %vm631, %v1009, 0.0
        %1013 = vadd.xlane.f32.xlu0 %v1012
        %v1014 = vpop.xlane.xlu0 %1013
        %v1015 = vmul.f32 %v1014, %v641
        %v1016 = vsub.f32 %v1009, %v1015
        %v1017 = vmul.f32 %v1016, %v1016
        %v1018 = vsel %vm631, %v1017, 0.0
        %1019 = vadd.xlane.f32.xlu0 %v1018
        %v1020 = vpop.xlane.xlu0 %1019
        %v1021 = vmul.f32 %v1020, %v641
        %v1022 = vadd.f32 %v1021, 1e-05
        %v1023 = vrsqrt.pop %v1022
        %v1024 = vmul.f32 %v1023, %v1022
        %v1025 = vmul.f32 %v1024, %v1023
        %v1026 = vmul.f32 0.5, %v1025
        %v1027 = vsub.f32 1.5, %v1026
        %v1028 = vmul.f32 %v1023, %v1027
        %vm1029 = vweird.f32 %v1022
        %vm1030 = vweird.f32 %v1023
        %vm1031 = vmor %vm1029, %vm1030
        %v1032 = vsel %vm1031, %v1023, %v1028
        %v1033 = vmul.f32 %v1016, %v1032
        %v1035 = vperm.slane %v1010, 0
        %v1037 = vmul.f32 %v1033, %v1035
        %v1039 = vperm.slane %v1011, 0
        %v1041 = vadd.f32 %v1037, %v1039
        %v1042 = vld [vmem:[%s609] sm:$0xff]
        %v1043 = vld [vmem:[%s609 + $0x8] sm:$0xff]
        %v1044 = vld [vmem:[%s609 + $0x10] sm:$0xff]
        %v1045 = vld [vmem:[%s609 + $0x18] sm:$0xff]
        %v1046 = vld [vmem:[%s612] sm:$0x1]
        %v1048 = vperm.slane %v1046, 0
        %v1051 = vsel %vm631, %v1041, 0
        %1053 = vmatpush.msra.mxu0 0.0
        %1054 = vmatpush.msra.mxu0 0.0
        %1055 = vmatpush.msra.mxu0 0.0
        %1056 = vmatpush.msra.mxu0 0.0
        %1057 = vmatpush.msra.mxu0 0.0
        %1058 = vmatpush.msra.mxu0 0.0
        %1059 = vmatpush.msra.mxu0 0.0
        %1060 = vmatpush.msra.mxu0 0.0
        %1061 = vmatpush.msra.mxu0 0.0
        %1062 = vmatpush.msra.mxu0 0.0
        %1063 = vmatpush.msra.mxu0 0.0
        %1064 = vmatpush.msra.mxu0 0.0
        %1065 = vmatpush.msra.mxu0 %v1045
        %1066 = vmatpush.msra.mxu0 %v1044
        %1067 = vmatpush.msra.mxu0 %v1043
        %1068 = vmatpush.msra.mxu0 %v1042
        %1069 = vmatmul.f32.gmra.mxu0 %v1051
        %v1070 = vpop.f32.mrf.mxu0
        %v1071 = vadd.f32 %v1048, %v1070
        %1072 = vdwg.mxu0
        %v1073 = vmul.f32 %v1071, 0.5
        %v1074 = vmul.f32 %v1071, 0.70710677
        %v1075 = vand.u32 2147483647, %v1074
        %v1076 = vmul.f32 %v1075, 0.3275911
        %v1077 = vadd.f32 %v1076, 1.0
        %v1078 = vrcp.pop %v1077
        %v1079 = vmul.f32 %v1078, 1.0614054
        %v1080 = vadd.f32 %v1079, -1.4531521
        %v1081 = vmul.f32 %v1080, %v1078
        %v1082 = vadd.f32 %v1081, 1.4214138
        %v1083 = vmul.f32 %v1082, %v1078
        %v1084 = vadd.f32 %v1083, -0.28449672
        %v1085 = vmul.f32 %v1084, %v1078
        %v1086 = vadd.f32 %v1085, 0.2548296
        %v1087 = vmul.f32 %v1086, %v1078
        %v1088 = vsub.f32 0.0, %v1075
        %v1089 = vmul.f32 %v1088, %v1075
        %v1090 = vmul.f32 %v1089, 1.442695
        %v1091 = vpow.pop %v1090
        %v1092 = vmul.f32 %v1087, %v1091
        %v1093 = vsub.f32 1.0, %v1092
        %vm1094 = vcmp.ge.f32.partialorder %v1074, 0.0
        %v1095 = vsub.f32 0.0, %v1093
        %v1096 = vsel %vm1094, %v1093, %v1095
        %v1097 = vadd.f32 %v1096, 1.0
        %v1098 = vmul.f32 %v1073, %v1097
        %v1099 = vld [vmem:[%s617] sm:$0xff]
        %v1100 = vld [vmem:[%s617 + $0x8] sm:$0xff]
        %v1101 = vld [vmem:[%s617 + $0x10] sm:$0xff]
        %v1102 = vld [vmem:[%s617 + $0x18] sm:$0xff]
        %v1103 = vld [vmem:[%s617 + $0x20] sm:$0xff]
        %v1104 = vld [vmem:[%s617 + $0x28] sm:$0xff]
        %v1105 = vld [vmem:[%s617 + $0x30] sm:$0xff]
        %v1106 = vld [vmem:[%s617 + $0x38] sm:$0xff]
        %v1107 = vld [vmem:[%s620] sm:$0x1]
        %v1109 = vperm.slane %v1107, 0
        %vm1111 = vcmask 523264
        %v1113 = vsel %vm1111, %v1098, 0
        %1115 = vmatpush.msra.mxu0 0.0
        %1116 = vmatpush.msra.mxu0 0.0
        %1117 = vmatpush.msra.mxu0 0.0
        %1118 = vmatpush.msra.mxu0 0.0
        %1119 = vmatpush.msra.mxu0 0.0
        %1120 = vmatpush.msra.mxu0 0.0
        %1121 = vmatpush.msra.mxu0 0.0
        %1122 = vmatpush.msra.mxu0 0.0
        %1123 = vmatpush.msra.mxu0 %v1106
        %1124 = vmatpush.msra.mxu0 %v1105
        %1125 = vmatpush.msra.mxu0 %v1104
        %1126 = vmatpush.msra.mxu0 %v1103
        %1127 = vmatpush.msra.mxu0 %v1102
        %1128 = vmatpush.msra.mxu0 %v1101
        %1129 = vmatpush.msra.mxu0 %v1100
        %1130 = vmatpush.msra.mxu0 %v1099
        %1131 = vmatmul.f32.gmra.mxu0 %v1113
        %v1132 = vpop.f32.mrf.mxu0
        %v1133 = vadd.f32 %v1109, %v1132
        %1134 = vdwg.mxu0
        %v1135 = vadd.f32 %v1009, %v1133
        %1136 = vst.msk [vmem:[%s579] sm:$0xff] %vm631, %v1135
        %s1137 = sand.u32 %s361, 1
        %s1138 = scalar_lea.sflag [#allocation4], %s1137
        %s1139 = sand.u32 %s361, 1
        %s1140 = smul.addr %s1139, 8
        %s1141 = scalar_lea.vmem [#allocation5], %s1140
        // Predicated region
        $region77: #{tpu_custom_call.1} parent=67 // pred_check
          %p1142 = pneg %p371
        $region78: #{tpu_custom_call.1} parent=67 // pred_check_branch
          %1144 = sbr.rel (%p1142) target = $region80
        $region79: #{tpu_custom_call.1} parent=67 // pred_region
          %1146 = vsyncadd %s1138, 0
          %s1147 = smul.addr %s33, 8
          %s1148 = scalar_lea.hbm %s12, %s1147
          %s1150 = sshll.u32 %s1141, 4
          %s1151 = int_to_ptr.vmem [resolvable:$true] %s1150
          %s1152 = sshll.u32 %s1148, 4
          %s1153 = int_to_ptr.hbm [resolvable:$true] %s1152
          %1155 = dma.vmem_to_hbm [thread:$0]  %s1151, 128, %s1153, %s1138
        $region80: #{tpu_custom_call.1} parent=67 // pred_fallthru
          _
      $region68: #{tpu_custom_call.1} parent=5 // pred_fallthru
        _
      %p1156 = scmp.le.s32.totalorder 2, %s24
      // Predicated region
      $region81: #{tpu_custom_call.1} parent=5 // pred_check
        %p1157 = pneg %p1156
      $region82: #{tpu_custom_call.1} parent=5 // pred_check_branch
        %1159 = sbr.rel (%p1157) target = $region84
      $region83: #{tpu_custom_call.1} parent=5 // pred_region
        %s1160 = ssub.s32 %s24, 2
        // Predicated region
        $region85: #{tpu_custom_call.1} parent=83 // pred_check
          %p1161 = pneg %p377
        $region86: #{tpu_custom_call.1} parent=83 // pred_check_branch
          %1163 = sbr.rel (%p1161) target = $region88
        $region87: #{tpu_custom_call.1} parent=83 // pred_region
          %s1164 = sand.u32 %s362, 1
          %s1165 = scalar_lea.sflag [#allocation4], %s1164
          %s1166 = sand.u32 %s362, 1
          %s1167 = smul.addr %s1166, 8
          %s1168 = scalar_lea.vmem [#allocation5], %s1167
          %1170 = dma.done %s1165, 128
        $region88: #{tpu_custom_call.1} parent=83 // pred_fallthru
          _
      $region84: #{tpu_custom_call.1} parent=5 // pred_fallthru
        _
    $region6: #{tpu_custom_call.1} parent=1 // loop_footer
      %s28 = sadd.s32 1, %s24
    $region7: #{tpu_custom_call.1} parent=1 // loop_footer_branch
      %23 = sbr.rel target = $region3
    $region8: #{tpu_custom_call.1} parent=1 // loop_exit
      _
    %1171 = vsyncpa [#allocation3], 1
    %s1172 = scalar_lea.sflag [#allocation3], 1
    %1173 = vsyncpa %s1172, 1
    %1174 = vsyncpa [#allocation4], 1
    %s1175 = scalar_lea.sflag [#allocation4], 1
    %1176 = vsyncpa %s1175, 1

</llo_original>
